<compile_context>
chip_gen: v5e
topology: v5e:2x2
jax: 0.10.0
libtpu: 0.0.40
codegen_flags: <defaults>
</compile_context>

<pallas_src>
import functools
import math

import jax
import jax.numpy as jnp
from jax.experimental import pallas as pl
from jax.experimental.pallas import tpu as pltpu


def _round_up(x, m):
    return ((x + m - 1) // m) * m


# ----------------------------- Pallas kernel ------------------------------- #

def _conv_matmul_kernel(*refs, has_bias, emit_stats, leaky):
    """Tiled, K-accumulating MXU matmul: out = patches @ W (+bias) (+LeakyReLU).

    Grid = (M_tiles, N_tiles, K_tiles) with K innermost ("arbitrary").
    Accumulation lives in an f32 VMEM scratch; the epilogue (last K step)
    optionally adds the bias, applies LeakyReLU(0.2), stores the output tile,
    and (for BatchNorm layers) emits per-channel sum / sum-of-squares.

    NOTE: pl.program_id / pl.num_programs are only called at the kernel top
    level, never inside pl.when bodies (required by the interpret fallback).
    """
    idx = 2
    p_ref, w_ref = refs[0], refs[1]
    if has_bias:
        b_ref = refs[idx]
        idx += 1
    o_ref = refs[idx]
    idx += 1
    if emit_stats:
        stats_ref = refs[idx]
        idx += 1
    acc_ref = refs[idx]

    k = pl.program_id(2)
    nk = pl.num_programs(2)

    @pl.when(k == 0)
    def _():
        acc_ref[...] = jnp.zeros_like(acc_ref)

    acc_ref[...] += jnp.dot(p_ref[...], w_ref[...],
                            preferred_element_type=jnp.float32)

    @pl.when(k == nk - 1)
    def _():
        z = acc_ref[...]
        if has_bias:
            z = z + b_ref[...]
        out = jnp.where(z >= 0.0, z, 0.2 * z) if leaky else z
        o_ref[...] = out.astype(o_ref.dtype)
        if emit_stats:
            # BN layers have no bias and no fused activation, so padded rows /
            # padded K columns contribute exact zeros -> no masking needed.
            # Two direct sub-tile writes (no concatenate / relayout).
            stats_ref[:, 0:1, :] = jnp.sum(z, axis=0, keepdims=True)[None]
            stats_ref[:, 1:2, :] = jnp.sum(z * z, axis=0, keepdims=True)[None]
            # TODO(synk): E[x^2]-E[x]^2 in f32 can cancel for large-magnitude
            # activations; a shifted / Welford accumulation would be sturdier.


# ------------------------------ JAX glue ----------------------------------- #

def _im2col(x_nhwc, k, stride, pad):
    """Extract (k,k) patches -> (N*OH*OW, k*k*C), patch order (kh, kw, c)."""
    n, h, w, c = x_nhwc.shape
    xp = jnp.pad(x_nhwc, ((0, 0), (pad, pad), (pad, pad), (0, 0)))
    oh = (h + 2 * pad - k) // stride + 1
    ow = (w + 2 * pad - k) // stride + 1
    cols = []
    for ih in range(k):
        for iw in range(k):
            cols.append(
                xp[:, ih:ih + stride * oh:stride, iw:iw + stride * ow:stride, :])
    patches = jnp.stack(cols, axis=3)            # (N, OH, OW, k*k, C)
    return patches.reshape(n * oh * ow, k * k * c), oh, ow


def _conv_tiles(m, k, cout):
    """Review-driven tiles: lane-dense tn == padded Cout (gn == 1), tk up to
    2048 (whole K when it fits) to amortize accumulator RMW + per-step
    overhead, tm up to 1024.  Worst-case double-buffered working set ~16 MiB,
    comfortably under every generation's VMEM once the scoped limit is raised."""
    cp = _round_up(cout, 128)
    tn = min(cp, 512)
    kp = _round_up(k, 128)
    if kp <= 2048:
        tk = kp
    else:
        tk = 2048
        kp = _round_up(k, tk)
    tm = min(1024, _round_up(m, 8))
    mp = _round_up(m, tm)
    return tm, mp, tk, kp, tn, cp


def _conv_block(x_nhwc, p, pre_norm, out_dtype):
    """One Conv2d layer.  `pre_norm` = (mean, inv_std, leaky) pending from the
    previous BatchNorm layer; it is applied here as plain-JAX elementwise that
    XLA fuses into the im2col gather (no standalone BN slab pass)."""
    if pre_norm is not None:
        mean, inv_std, do_leaky = pre_norm
        y = (x_nhwc.astype(jnp.float32) - mean) * inv_std
        if do_leaky:
            y = jnp.where(y >= 0.0, y, 0.2 * y)
        x_nhwc = y
    x_nhwc = x_nhwc.astype(jnp.bfloat16)

    n = x_nhwc.shape[0]
    w, b = p["w"], p["b"]
    cout, cin, kh, kw = w.shape

    # TODO(synk): direct-conv tap streaming would remove this materialized slab.
    patches, oh, ow = _im2col(x_nhwc, kh, p["stride"], p["pad"])
    m, kdim = patches.shape
    tm, mp, tk, kp, tn, cp = _conv_tiles(m, kdim, cout)
    gm, gn, gk = mp // tm, cp // tn, kp // tk

    patches = jnp.pad(patches, ((0, mp - m), (0, kp - kdim)))
    wt = jnp.transpose(w, (2, 3, 1, 0)).reshape(kdim, cout).astype(jnp.bfloat16)
    wt = jnp.pad(wt, ((0, kp - kdim), (0, cp - cout)))

    norm = p["norm"]
    has_bias = not norm                  # bias is cancelled by BN mean-sub
    fuse_act = p["act"] and not norm     # LeakyReLU fused when no BN follows

    inputs = [patches, wt]
    in_specs = [
        pl.BlockSpec((tm, tk), lambda i, j, k: (i, k)),
        pl.BlockSpec((tk, tn), lambda i, j, k: (k, j)),
    ]
    if has_bias:
        bias = jnp.pad(b.astype(jnp.float32), (0, cp - cout)).reshape(1, cp)
        inputs.append(bias)
        in_specs.append(pl.BlockSpec((1, tn), lambda i, j, k: (0, j)))

    out_shapes = [jax.ShapeDtypeStruct((mp, cp), out_dtype)]
    out_specs = [pl.BlockSpec((tm, tn), lambda i, j, k: (i, j))]
    if norm:
        out_shapes.append(jax.ShapeDtypeStruct((gm, 2, cp), jnp.float32))
        out_specs.append(pl.BlockSpec((1, 2, tn), lambda i, j, k: (i, 0, j)))

    results = pl.pallas_call(
        functools.partial(_conv_matmul_kernel, has_bias=has_bias,
                          emit_stats=norm, leaky=fuse_act),
        out_shape=tuple(out_shapes) if norm else out_shapes[0],
        grid=(gm, gn, gk),
        in_specs=in_specs,
        out_specs=tuple(out_specs) if norm else out_specs[0],
        scratch_shapes=[pltpu.VMEM((tm, tn), jnp.float32)],
        compiler_params=pltpu.CompilerParams(
            dimension_semantics=("parallel", "parallel", "arbitrary"),
            vmem_limit_bytes=48 * 1024 * 1024),
    )(*inputs)

    if norm:
        out_pad, stats = results
        tot = jnp.sum(stats, axis=0)                       # (2, cp)
        mean = tot[0, :cout] / m
        var = jnp.maximum(tot[1, :cout] / m - mean * mean, 0.0)  # biased var
        inv_std = jax.lax.rsqrt(var + 1e-5)
        next_norm = (mean, inv_std, p["act"])
    else:
        out_pad = results
        next_norm = None

    out = out_pad[:m, :cout].reshape(n, oh, ow, cout)
    return out, next_norm


# --------------------------- parameter creation ----------------------------- #

def _xavier_normal(key, shape):
    cout, cin, kh, kw = shape
    fan_in = cin * kh * kw
    fan_out = cout * kh * kw
    std = math.sqrt(2.0 / (fan_in + fan_out))
    return std * jax.random.normal(key, shape, dtype=jnp.float32)


def _conv_bias(key, shape):
    cout, cin, kh, kw = shape
    bound = 1.0 / math.sqrt(cin * kh * kw)
    return jax.random.uniform(key, (cout,), jnp.float32, -bound, bound)


def make_convnet_params(key, input_nc, ndf=64, n_layers=3):
    """Mirror ConvNet.__init__ layer structure. Returns list of layer dicts."""
    kernel_size = 4
    padding = math.ceil((kernel_size - 1.0) / 2)  # = 2
    layers = []
    layers.append(dict(cin=input_nc, cout=ndf, stride=2, pad=padding,
                       norm=False, act=True))
    nf = ndf
    for _ in range(1, n_layers):
        nf_prev, nf = nf, min(nf * 2, 512)
        layers.append(dict(cin=nf_prev, cout=nf, stride=2, pad=padding,
                           norm=True, act=True))
    nf_prev, nf = nf, min(nf * 2, 512)
    layers.append(dict(cin=nf_prev, cout=nf, stride=1, pad=padding,
                       norm=True, act=True))
    layers.append(dict(cin=nf, cout=1, stride=1, pad=padding,
                       norm=False, act=False))

    params = []
    for cfg in layers:
        key, kw_, kb_ = jax.random.split(key, 3)
        shape = (cfg["cout"], cfg["cin"], kernel_size, kernel_size)
        params.append(dict(
            w=_xavier_normal(kw_, shape),
            b=_conv_bias(kb_, shape),
            **cfg,
        ))
    return params


# ------------------------------ forward pass -------------------------------- #

def convnet_forward(x_nchw, params):
    """Forward pass matching ConvNet.forward. Input/output in NCHW."""
    x = jnp.transpose(x_nchw, (0, 2, 3, 1))          # -> NHWC
    pre = None                                        # pending BN (+LeakyReLU)
    for li, p in enumerate(params):
        last = (li == len(params) - 1)
        x, pre = _conv_block(x, p, pre,
                             out_dtype=jnp.float32 if last else jnp.bfloat16)
    return jnp.transpose(x, (0, 3, 1, 2)).astype(jnp.float32)   # -> NCHW f32


# ---------------------------------- main ------------------------------------ #

if __name__ == "__main__":
    key = jax.random.PRNGKey(0)
    k_x, k_p = jax.random.split(key)

    # Small shapes: batch=2, input_nc=4, spatial=16, ndf=8, n_layers=3.
    N, input_nc, H, W = 2, 4, 16, 16
    ndf, n_layers = 8, 3

    x = jax.random.normal(k_x, (N, input_nc, H, W), dtype=jnp.float32)
    params = make_convnet_params(k_p, input_nc, ndf=ndf, n_layers=n_layers)

    fwd = jax.jit(lambda inp: convnet_forward(inp, params))
    out = jax.block_until_ready(fwd(x))

    # Expected PatchGAN output: (N, 1, 5, 5) for 16x16 input with this config.
    assert out.shape == (N, 1, 5, 5), out.shape
    assert bool(jnp.all(jnp.isfinite(out)))
    print("KERNEL_OK")
</pallas_src>

<mosaic_0001>
module attributes {stable_mosaic.version = 11 : i64} {
  func.func @_conv_matmul_kernel(%arg0: i32, %arg1: i32, %arg2: i32, %arg3: memref<168x128xbf16, #tpu.memory_space<vmem>>, %arg4: memref<128x128xbf16, #tpu.memory_space<vmem>>, %arg5: memref<1x128xf32, #tpu.memory_space<vmem>>, %arg6: memref<168x128xbf16, #tpu.memory_space<vmem>>, %arg7: memref<168x128xf32, #tpu.memory_space<vmem>>) attributes {dimension_semantics = [#tpu.dimension_semantics<parallel>, #tpu.dimension_semantics<parallel>, #tpu.dimension_semantics<arbitrary>], iteration_bounds = array<i64: 1, 1, 1>, scalar_prefetch = 0 : i64, scratch_operands = 1 : i64, tpu.core_type = #tpu.core_type<tc>, window_params = [{transform_indices = @transform_0, window_bounds = array<i64: 168, 128>}, {transform_indices = @transform_1, window_bounds = array<i64: 128, 128>}, {transform_indices = @transform_2, window_bounds = array<i64: 1, 128>}, {transform_indices = @transform_3, window_bounds = array<i64: 168, 128>}]} {
    %c0_i32 = arith.constant 0 : i32
    %0 = arith.cmpi eq, %arg2, %c0_i32 : i32
    %1 = arith.extui %0 : i1 to i32
    %c0_i32_0 = arith.constant 0 : i32
    %2 = arith.cmpi ne, %1, %c0_i32_0 : i32
    scf.if %2 {
      %cst_10 = arith.constant 0.000000e+00 : f32
      %12 = vector.broadcast %cst_10 : f32 to vector<168x128xf32>
      %c0_11 = arith.constant 0 : index
      %c0_12 = arith.constant 0 : index
      %13 = vector.load %arg7[%c0_11, %c0_12] : memref<168x128xf32, #tpu.memory_space<vmem>>, vector<168x128xf32>
      tpu.vector_store %arg7[%c0_11, %c0_12], %12 {strides = array<i32>} : memref<168x128xf32, #tpu.memory_space<vmem>>, vector<168x128xf32>,
    } else {
    }
    %c0 = arith.constant 0 : index
    %c0_1 = arith.constant 0 : index
    %3 = vector.load %arg7[%c0, %c0_1] : memref<168x128xf32, #tpu.memory_space<vmem>>, vector<168x128xf32>
    %c0_2 = arith.constant 0 : index
    %c0_3 = arith.constant 0 : index
    %4 = vector.load %arg3[%c0_2, %c0_3] : memref<168x128xbf16, #tpu.memory_space<vmem>>, vector<168x128xbf16>
    %c0_4 = arith.constant 0 : index
    %c0_5 = arith.constant 0 : index
    %5 = vector.load %arg4[%c0_4, %c0_5] : memref<128x128xbf16, #tpu.memory_space<vmem>>, vector<128x128xbf16>
    %cst = arith.constant dense<0.000000e+00> : vector<168x128xf32>
    %6 = tpu.matmul %4, %5, %cst {dimension_numbers = #tpu.dot_dimension_numbers<[1], [0], [0], [1], [0, 0, 1, 1], [], []>} : vector<168x128xbf16>, vector<128x128xbf16>, vector<168x128xf32> -> vector<168x128xf32>
    %7 = arith.addf %3, %6 : vector<168x128xf32>
    %c0_6 = arith.constant 0 : index
    %c0_7 = arith.constant 0 : index
    %8 = vector.load %arg7[%c0_6, %c0_7] : memref<168x128xf32, #tpu.memory_space<vmem>>, vector<168x128xf32>
    tpu.vector_store %arg7[%c0_6, %c0_7], %7 {strides = array<i32>} : memref<168x128xf32, #tpu.memory_space<vmem>>, vector<168x128xf32>,
    %c0_i32_8 = arith.constant 0 : i32
    %9 = arith.cmpi eq, %arg2, %c0_i32_8 : i32
    %10 = arith.extui %9 : i1 to i32
    %c0_i32_9 = arith.constant 0 : i32
    %11 = arith.cmpi ne, %10, %c0_i32_9 : i32
    scf.if %11 {
      %c0_10 = arith.constant 0 : index
      %c0_11 = arith.constant 0 : index
      %12 = vector.load %arg7[%c0_10, %c0_11] : memref<168x128xf32, #tpu.memory_space<vmem>>, vector<168x128xf32>
      %c0_12 = arith.constant 0 : index
      %c0_13 = arith.constant 0 : index
      %13 = vector.load %arg5[%c0_12, %c0_13] : memref<1x128xf32, #tpu.memory_space<vmem>>, vector<1x128xf32>
      %14 = vector.broadcast %13 : vector<1x128xf32> to vector<168x128xf32>
      %15 = arith.addf %12, %14 : vector<168x128xf32>
      %cst_14 = arith.constant 0.000000e+00 : f32
      %16 = vector.broadcast %cst_14 : f32 to vector<168x128xf32>
      %17 = arith.cmpf oge, %15, %16 : vector<168x128xf32>
      %cst_15 = arith.constant 2.000000e-01 : f32
      %18 = vector.broadcast %cst_15 : f32 to vector<168x128xf32>
      %19 = arith.mulf %18, %15 : vector<168x128xf32>
      %20 = arith.select %17, %15, %19 : vector<168x128xi1>, vector<168x128xf32>
      %21 = arith.truncf %20 : vector<168x128xf32> to vector<168x128xbf16>
      %c0_16 = arith.constant 0 : index
      %c0_17 = arith.constant 0 : index
      %22 = vector.load %arg6[%c0_16, %c0_17] : memref<168x128xbf16, #tpu.memory_space<vmem>>, vector<168x128xbf16>
      tpu.vector_store %arg6[%c0_16, %c0_17], %21 {strides = array<i32>} : memref<168x128xbf16, #tpu.memory_space<vmem>>, vector<168x128xbf16>,
    } else {
    }
    return
  }
  func.func @transform_0(%arg0: i32, %arg1: i32, %arg2: i32) -> (i32, i32) {
    %c0_i32 = arith.constant 0 : i32
    return %arg0, %arg2 : i32, i32
  }
  func.func @transform_1(%arg0: i32, %arg1: i32, %arg2: i32) -> (i32, i32) {
    %c0_i32 = arith.constant 0 : i32
    return %arg2, %arg1 : i32, i32
  }
  func.func @transform_2(%arg0: i32, %arg1: i32, %arg2: i32) -> (i32, i32) {
    %c0_i32 = arith.constant 0 : i32
    %c0_i32_0 = arith.constant 0 : i32
    return %c0_i32, %arg1 : i32, i32
  }
  func.func @transform_3(%arg0: i32, %arg1: i32, %arg2: i32) -> (i32, i32) {
    %c0_i32 = arith.constant 0 : i32
    return %arg0, %arg1 : i32, i32
  }
}

module attributes {stable_mosaic.version = 11 : i64} {
  func.func @_conv_matmul_kernel(%arg0: i32, %arg1: i32, %arg2: i32, %arg3: memref<56x128xbf16, #tpu.memory_space<vmem>>, %arg4: memref<128x128xbf16, #tpu.memory_space<vmem>>, %arg5: memref<56x128xbf16, #tpu.memory_space<vmem>>, %arg6: memref<1x2x128xf32, #tpu.memory_space<vmem>>, %arg7: memref<56x128xf32, #tpu.memory_space<vmem>>) attributes {dimension_semantics = [#tpu.dimension_semantics<parallel>, #tpu.dimension_semantics<parallel>, #tpu.dimension_semantics<arbitrary>], iteration_bounds = array<i64: 1, 1, 1>, scalar_prefetch = 0 : i64, scratch_operands = 1 : i64, tpu.core_type = #tpu.core_type<tc>, window_params = [{transform_indices = @transform_0, window_bounds = array<i64: 56, 128>}, {transform_indices = @transform_1, window_bounds = array<i64: 128, 128>}, {transform_indices = @transform_2, window_bounds = array<i64: 56, 128>}, {transform_indices = @transform_3, window_bounds = array<i64: 1, 2, 128>}]} {
    %c0_i32 = arith.constant 0 : i32
    %0 = arith.cmpi eq, %arg2, %c0_i32 : i32
    %1 = arith.extui %0 : i1 to i32
    %c0_i32_0 = arith.constant 0 : i32
    %2 = arith.cmpi ne, %1, %c0_i32_0 : i32
    scf.if %2 {
      %cst_10 = arith.constant 0.000000e+00 : f32
      %12 = vector.broadcast %cst_10 : f32 to vector<56x128xf32>
      %c0_11 = arith.constant 0 : index
      %c0_12 = arith.constant 0 : index
      %13 = vector.load %arg7[%c0_11, %c0_12] : memref<56x128xf32, #tpu.memory_space<vmem>>, vector<56x128xf32>
      tpu.vector_store %arg7[%c0_11, %c0_12], %12 {strides = array<i32>} : memref<56x128xf32, #tpu.memory_space<vmem>>, vector<56x128xf32>,
    } else {
    }
    %c0 = arith.constant 0 : index
    %c0_1 = arith.constant 0 : index
    %3 = vector.load %arg7[%c0, %c0_1] : memref<56x128xf32, #tpu.memory_space<vmem>>, vector<56x128xf32>
    %c0_2 = arith.constant 0 : index
    %c0_3 = arith.constant 0 : index
    %4 = vector.load %arg3[%c0_2, %c0_3] : memref<56x128xbf16, #tpu.memory_space<vmem>>, vector<56x128xbf16>
    %c0_4 = arith.constant 0 : index
    %c0_5 = arith.constant 0 : index
    %5 = vector.load %arg4[%c0_4, %c0_5] : memref<128x128xbf16, #tpu.memory_space<vmem>>, vector<128x128xbf16>
    %cst = arith.constant dense<0.000000e+00> : vector<56x128xf32>
    %6 = tpu.matmul %4, %5, %cst {dimension_numbers = #tpu.dot_dimension_numbers<[1], [0], [0], [1], [0, 0, 1, 1], [], []>} : vector<56x128xbf16>, vector<128x128xbf16>, vector<56x128xf32> -> vector<56x128xf32>
    %7 = arith.addf %3, %6 : vector<56x128xf32>
    %c0_6 = arith.constant 0 : index
    %c0_7 = arith.constant 0 : index
    %8 = vector.load %arg7[%c0_6, %c0_7] : memref<56x128xf32, #tpu.memory_space<vmem>>, vector<56x128xf32>
    tpu.vector_store %arg7[%c0_6, %c0_7], %7 {strides = array<i32>} : memref<56x128xf32, #tpu.memory_space<vmem>>, vector<56x128xf32>,
    %c0_i32_8 = arith.constant 0 : i32
    %9 = arith.cmpi eq, %arg2, %c0_i32_8 : i32
    %10 = arith.extui %9 : i1 to i32
    %c0_i32_9 = arith.constant 0 : i32
    %11 = arith.cmpi ne, %10, %c0_i32_9 : i32
    scf.if %11 {
      %c0_10 = arith.constant 0 : index
      %c0_11 = arith.constant 0 : index
      %12 = vector.load %arg7[%c0_10, %c0_11] : memref<56x128xf32, #tpu.memory_space<vmem>>, vector<56x128xf32>
      %13 = arith.truncf %12 : vector<56x128xf32> to vector<56x128xbf16>
      %c0_12 = arith.constant 0 : index
      %c0_13 = arith.constant 0 : index
      %14 = vector.load %arg5[%c0_12, %c0_13] : memref<56x128xbf16, #tpu.memory_space<vmem>>, vector<56x128xbf16>
      tpu.vector_store %arg5[%c0_12, %c0_13], %13 {strides = array<i32>} : memref<56x128xbf16, #tpu.memory_space<vmem>>, vector<56x128xbf16>,
      %cst_14 = arith.constant dense<0.000000e+00> : vector<128xf32>
      %15 = vector.multi_reduction <add>, %12, %cst_14 [0] : vector<56x128xf32> to vector<128xf32>
      %16 = vector.shape_cast %15 : vector<128xf32> to vector<1x128xf32>
      %17 = vector.shape_cast %16 : vector<1x128xf32> to vector<1x1x128xf32>
      %c0_15 = arith.constant 0 : index
      %c0_16 = arith.constant 0 : index
      %c0_17 = arith.constant 0 : index
      %18 = vector.load %arg6[%c0_15, %c0_16, %c0_17] : memref<1x2x128xf32, #tpu.memory_space<vmem>>, vector<1x1x128xf32>
      tpu.vector_store %arg6[%c0_15, %c0_16, %c0_17], %17 {strides = array<i32>} : memref<1x2x128xf32, #tpu.memory_space<vmem>>, vector<1x1x128xf32>,
      %19 = arith.mulf %12, %12 : vector<56x128xf32>
      %cst_18 = arith.constant dense<0.000000e+00> : vector<128xf32>
      %20 = vector.multi_reduction <add>, %19, %cst_18 [0] : vector<56x128xf32> to vector<128xf32>
      %21 = vector.shape_cast %20 : vector<128xf32> to vector<1x128xf32>
      %22 = vector.shape_cast %21 : vector<1x128xf32> to vector<1x1x128xf32>
      %c0_19 = arith.constant 0 : index
      %c1 = arith.constant 1 : index
      %c0_20 = arith.constant 0 : index
      %23 = vector.load %arg6[%c0_19, %c1, %c0_20] : memref<1x2x128xf32, #tpu.memory_space<vmem>>, vector<1x1x128xf32>
      tpu.vector_store %arg6[%c0_19, %c1, %c0_20], %22 {strides = array<i32>} : memref<1x2x128xf32, #tpu.memory_space<vmem>>, vector<1x1x128xf32>,
    } else {
    }
    return
  }
  func.func @transform_0(%arg0: i32, %arg1: i32, %arg2: i32) -> (i32, i32) {
    %c0_i32 = arith.constant 0 : i32
    return %arg0, %arg2 : i32, i32
  }
  func.func @transform_1(%arg0: i32, %arg1: i32, %arg2: i32) -> (i32, i32) {
    %c0_i32 = arith.constant 0 : i32
    return %arg2, %arg1 : i32, i32
  }
  func.func @transform_2(%arg0: i32, %arg1: i32, %arg2: i32) -> (i32, i32) {
    %c0_i32 = arith.constant 0 : i32
    return %arg0, %arg1 : i32, i32
  }
  func.func @transform_3(%arg0: i32, %arg1: i32, %arg2: i32) -> (i32, i32, i32) {
    %c0_i32 = arith.constant 0 : i32
    %c0_i32_0 = arith.constant 0 : i32
    return %arg0, %c0_i32, %arg1 : i32, i32, i32
  }
}

module attributes {stable_mosaic.version = 11 : i64} {
  func.func @_conv_matmul_kernel(%arg0: i32, %arg1: i32, %arg2: i32, %arg3: memref<24x256xbf16, #tpu.memory_space<vmem>>, %arg4: memref<256x128xbf16, #tpu.memory_space<vmem>>, %arg5: memref<24x128xbf16, #tpu.memory_space<vmem>>, %arg6: memref<1x2x128xf32, #tpu.memory_space<vmem>>, %arg7: memref<24x128xf32, #tpu.memory_space<vmem>>) attributes {dimension_semantics = [#tpu.dimension_semantics<parallel>, #tpu.dimension_semantics<parallel>, #tpu.dimension_semantics<arbitrary>], iteration_bounds = array<i64: 1, 1, 1>, scalar_prefetch = 0 : i64, scratch_operands = 1 : i64, tpu.core_type = #tpu.core_type<tc>, window_params = [{transform_indices = @transform_0, window_bounds = array<i64: 24, 256>}, {transform_indices = @transform_1, window_bounds = array<i64: 256, 128>}, {transform_indices = @transform_2, window_bounds = array<i64: 24, 128>}, {transform_indices = @transform_3, window_bounds = array<i64: 1, 2, 128>}]} {
    %c0_i32 = arith.constant 0 : i32
    %0 = arith.cmpi eq, %arg2, %c0_i32 : i32
    %1 = arith.extui %0 : i1 to i32
    %c0_i32_0 = arith.constant 0 : i32
    %2 = arith.cmpi ne, %1, %c0_i32_0 : i32
    scf.if %2 {
      %cst_10 = arith.constant 0.000000e+00 : f32
      %12 = vector.broadcast %cst_10 : f32 to vector<24x128xf32>
      %c0_11 = arith.constant 0 : index
      %c0_12 = arith.constant 0 : index
      %13 = vector.load %arg7[%c0_11, %c0_12] : memref<24x128xf32, #tpu.memory_space<vmem>>, vector<24x128xf32>
      tpu.vector_store %arg7[%c0_11, %c0_12], %12 {strides = array<i32>} : memref<24x128xf32, #tpu.memory_space<vmem>>, vector<24x128xf32>,
    } else {
    }
    %c0 = arith.constant 0 : index
    %c0_1 = arith.constant 0 : index
    %3 = vector.load %arg7[%c0, %c0_1] : memref<24x128xf32, #tpu.memory_space<vmem>>, vector<24x128xf32>
    %c0_2 = arith.constant 0 : index
    %c0_3 = arith.constant 0 : index
    %4 = vector.load %arg3[%c0_2, %c0_3] : memref<24x256xbf16, #tpu.memory_space<vmem>>, vector<24x256xbf16>
    %c0_4 = arith.constant 0 : index
    %c0_5 = arith.constant 0 : index
    %5 = vector.load %arg4[%c0_4, %c0_5] : memref<256x128xbf16, #tpu.memory_space<vmem>>, vector<256x128xbf16>
    %cst = arith.constant dense<0.000000e+00> : vector<24x128xf32>
    %6 = tpu.matmul %4, %5, %cst {dimension_numbers = #tpu.dot_dimension_numbers<[1], [0], [0], [1], [0, 0, 1, 1], [], []>} : vector<24x256xbf16>, vector<256x128xbf16>, vector<24x128xf32> -> vector<24x128xf32>
    %7 = arith.addf %3, %6 : vector<24x128xf32>
    %c0_6 = arith.constant 0 : index
    %c0_7 = arith.constant 0 : index
    %8 = vector.load %arg7[%c0_6, %c0_7] : memref<24x128xf32, #tpu.memory_space<vmem>>, vector<24x128xf32>
    tpu.vector_store %arg7[%c0_6, %c0_7], %7 {strides = array<i32>} : memref<24x128xf32, #tpu.memory_space<vmem>>, vector<24x128xf32>,
    %c0_i32_8 = arith.constant 0 : i32
    %9 = arith.cmpi eq, %arg2, %c0_i32_8 : i32
    %10 = arith.extui %9 : i1 to i32
    %c0_i32_9 = arith.constant 0 : i32
    %11 = arith.cmpi ne, %10, %c0_i32_9 : i32
    scf.if %11 {
      %c0_10 = arith.constant 0 : index
      %c0_11 = arith.constant 0 : index
      %12 = vector.load %arg7[%c0_10, %c0_11] : memref<24x128xf32, #tpu.memory_space<vmem>>, vector<24x128xf32>
      %13 = arith.truncf %12 : vector<24x128xf32> to vector<24x128xbf16>
      %c0_12 = arith.constant 0 : index
      %c0_13 = arith.constant 0 : index
      %14 = vector.load %arg5[%c0_12, %c0_13] : memref<24x128xbf16, #tpu.memory_space<vmem>>, vector<24x128xbf16>
      tpu.vector_store %arg5[%c0_12, %c0_13], %13 {strides = array<i32>} : memref<24x128xbf16, #tpu.memory_space<vmem>>, vector<24x128xbf16>,
      %cst_14 = arith.constant dense<0.000000e+00> : vector<128xf32>
      %15 = vector.multi_reduction <add>, %12, %cst_14 [0] : vector<24x128xf32> to vector<128xf32>
      %16 = vector.shape_cast %15 : vector<128xf32> to vector<1x128xf32>
      %17 = vector.shape_cast %16 : vector<1x128xf32> to vector<1x1x128xf32>
      %c0_15 = arith.constant 0 : index
      %c0_16 = arith.constant 0 : index
      %c0_17 = arith.constant 0 : index
      %18 = vector.load %arg6[%c0_15, %c0_16, %c0_17] : memref<1x2x128xf32, #tpu.memory_space<vmem>>, vector<1x1x128xf32>
      tpu.vector_store %arg6[%c0_15, %c0_16, %c0_17], %17 {strides = array<i32>} : memref<1x2x128xf32, #tpu.memory_space<vmem>>, vector<1x1x128xf32>,
      %19 = arith.mulf %12, %12 : vector<24x128xf32>
      %cst_18 = arith.constant dense<0.000000e+00> : vector<128xf32>
      %20 = vector.multi_reduction <add>, %19, %cst_18 [0] : vector<24x128xf32> to vector<128xf32>
      %21 = vector.shape_cast %20 : vector<128xf32> to vector<1x128xf32>
      %22 = vector.shape_cast %21 : vector<1x128xf32> to vector<1x1x128xf32>
      %c0_19 = arith.constant 0 : index
      %c1 = arith.constant 1 : index
      %c0_20 = arith.constant 0 : index
      %23 = vector.load %arg6[%c0_19, %c1, %c0_20] : memref<1x2x128xf32, #tpu.memory_space<vmem>>, vector<1x1x128xf32>
      tpu.vector_store %arg6[%c0_19, %c1, %c0_20], %22 {strides = array<i32>} : memref<1x2x128xf32, #tpu.memory_space<vmem>>, vector<1x1x128xf32>,
    } else {
    }
    return
  }
  func.func @transform_0(%arg0: i32, %arg1: i32, %arg2: i32) -> (i32, i32) {
    %c0_i32 = arith.constant 0 : i32
    return %arg0, %arg2 : i32, i32
  }
  func.func @transform_1(%arg0: i32, %arg1: i32, %arg2: i32) -> (i32, i32) {
    %c0_i32 = arith.constant 0 : i32
    return %arg2, %arg1 : i32, i32
  }
  func.func @transform_2(%arg0: i32, %arg1: i32, %arg2: i32) -> (i32, i32) {
    %c0_i32 = arith.constant 0 : i32
    return %arg0, %arg1 : i32, i32
  }
  func.func @transform_3(%arg0: i32, %arg1: i32, %arg2: i32) -> (i32, i32, i32) {
    %c0_i32 = arith.constant 0 : i32
    %c0_i32_0 = arith.constant 0 : i32
    return %arg0, %c0_i32, %arg1 : i32, i32, i32
  }
}

module attributes {stable_mosaic.version = 11 : i64} {
  func.func @_conv_matmul_kernel(%arg0: i32, %arg1: i32, %arg2: i32, %arg3: memref<32x512xbf16, #tpu.memory_space<vmem>>, %arg4: memref<512x128xbf16, #tpu.memory_space<vmem>>, %arg5: memref<32x128xbf16, #tpu.memory_space<vmem>>, %arg6: memref<1x2x128xf32, #tpu.memory_space<vmem>>, %arg7: memref<32x128xf32, #tpu.memory_space<vmem>>) attributes {dimension_semantics = [#tpu.dimension_semantics<parallel>, #tpu.dimension_semantics<parallel>, #tpu.dimension_semantics<arbitrary>], iteration_bounds = array<i64: 1, 1, 1>, scalar_prefetch = 0 : i64, scratch_operands = 1 : i64, tpu.core_type = #tpu.core_type<tc>, window_params = [{transform_indices = @transform_0, window_bounds = array<i64: 32, 512>}, {transform_indices = @transform_1, window_bounds = array<i64: 512, 128>}, {transform_indices = @transform_2, window_bounds = array<i64: 32, 128>}, {transform_indices = @transform_3, window_bounds = array<i64: 1, 2, 128>}]} {
    %c0_i32 = arith.constant 0 : i32
    %0 = arith.cmpi eq, %arg2, %c0_i32 : i32
    %1 = arith.extui %0 : i1 to i32
    %c0_i32_0 = arith.constant 0 : i32
    %2 = arith.cmpi ne, %1, %c0_i32_0 : i32
    scf.if %2 {
      %cst_10 = arith.constant 0.000000e+00 : f32
      %12 = vector.broadcast %cst_10 : f32 to vector<32x128xf32>
      %c0_11 = arith.constant 0 : index
      %c0_12 = arith.constant 0 : index
      %13 = vector.load %arg7[%c0_11, %c0_12] : memref<32x128xf32, #tpu.memory_space<vmem>>, vector<32x128xf32>
      tpu.vector_store %arg7[%c0_11, %c0_12], %12 {strides = array<i32>} : memref<32x128xf32, #tpu.memory_space<vmem>>, vector<32x128xf32>,
    } else {
    }
    %c0 = arith.constant 0 : index
    %c0_1 = arith.constant 0 : index
    %3 = vector.load %arg7[%c0, %c0_1] : memref<32x128xf32, #tpu.memory_space<vmem>>, vector<32x128xf32>
    %c0_2 = arith.constant 0 : index
    %c0_3 = arith.constant 0 : index
    %4 = vector.load %arg3[%c0_2, %c0_3] : memref<32x512xbf16, #tpu.memory_space<vmem>>, vector<32x512xbf16>
    %c0_4 = arith.constant 0 : index
    %c0_5 = arith.constant 0 : index
    %5 = vector.load %arg4[%c0_4, %c0_5] : memref<512x128xbf16, #tpu.memory_space<vmem>>, vector<512x128xbf16>
    %cst = arith.constant dense<0.000000e+00> : vector<32x128xf32>
    %6 = tpu.matmul %4, %5, %cst {dimension_numbers = #tpu.dot_dimension_numbers<[1], [0], [0], [1], [0, 0, 1, 1], [], []>} : vector<32x512xbf16>, vector<512x128xbf16>, vector<32x128xf32> -> vector<32x128xf32>
    %7 = arith.addf %3, %6 : vector<32x128xf32>
    %c0_6 = arith.constant 0 : index
    %c0_7 = arith.constant 0 : index
    %8 = vector.load %arg7[%c0_6, %c0_7] : memref<32x128xf32, #tpu.memory_space<vmem>>, vector<32x128xf32>
    tpu.vector_store %arg7[%c0_6, %c0_7], %7 {strides = array<i32>} : memref<32x128xf32, #tpu.memory_space<vmem>>, vector<32x128xf32>,
    %c0_i32_8 = arith.constant 0 : i32
    %9 = arith.cmpi eq, %arg2, %c0_i32_8 : i32
    %10 = arith.extui %9 : i1 to i32
    %c0_i32_9 = arith.constant 0 : i32
    %11 = arith.cmpi ne, %10, %c0_i32_9 : i32
    scf.if %11 {
      %c0_10 = arith.constant 0 : index
      %c0_11 = arith.constant 0 : index
      %12 = vector.load %arg7[%c0_10, %c0_11] : memref<32x128xf32, #tpu.memory_space<vmem>>, vector<32x128xf32>
      %13 = arith.truncf %12 : vector<32x128xf32> to vector<32x128xbf16>
      %c0_12 = arith.constant 0 : index
      %c0_13 = arith.constant 0 : index
      %14 = vector.load %arg5[%c0_12, %c0_13] : memref<32x128xbf16, #tpu.memory_space<vmem>>, vector<32x128xbf16>
      tpu.vector_store %arg5[%c0_12, %c0_13], %13 {strides = array<i32>} : memref<32x128xbf16, #tpu.memory_space<vmem>>, vector<32x128xbf16>,
      %cst_14 = arith.constant dense<0.000000e+00> : vector<128xf32>
      %15 = vector.multi_reduction <add>, %12, %cst_14 [0] : vector<32x128xf32> to vector<128xf32>
      %16 = vector.shape_cast %15 : vector<128xf32> to vector<1x128xf32>
      %17 = vector.shape_cast %16 : vector<1x128xf32> to vector<1x1x128xf32>
      %c0_15 = arith.constant 0 : index
      %c0_16 = arith.constant 0 : index
      %c0_17 = arith.constant 0 : index
      %18 = vector.load %arg6[%c0_15, %c0_16, %c0_17] : memref<1x2x128xf32, #tpu.memory_space<vmem>>, vector<1x1x128xf32>
      tpu.vector_store %arg6[%c0_15, %c0_16, %c0_17], %17 {strides = array<i32>} : memref<1x2x128xf32, #tpu.memory_space<vmem>>, vector<1x1x128xf32>,
      %19 = arith.mulf %12, %12 : vector<32x128xf32>
      %cst_18 = arith.constant dense<0.000000e+00> : vector<128xf32>
      %20 = vector.multi_reduction <add>, %19, %cst_18 [0] : vector<32x128xf32> to vector<128xf32>
      %21 = vector.shape_cast %20 : vector<128xf32> to vector<1x128xf32>
      %22 = vector.shape_cast %21 : vector<1x128xf32> to vector<1x1x128xf32>
      %c0_19 = arith.constant 0 : index
      %c1 = arith.constant 1 : index
      %c0_20 = arith.constant 0 : index
      %23 = vector.load %arg6[%c0_19, %c1, %c0_20] : memref<1x2x128xf32, #tpu.memory_space<vmem>>, vector<1x1x128xf32>
      tpu.vector_store %arg6[%c0_19, %c1, %c0_20], %22 {strides = array<i32>} : memref<1x2x128xf32, #tpu.memory_space<vmem>>, vector<1x1x128xf32>,
    } else {
    }
    return
  }
  func.func @transform_0(%arg0: i32, %arg1: i32, %arg2: i32) -> (i32, i32) {
    %c0_i32 = arith.constant 0 : i32
    return %arg0, %arg2 : i32, i32
  }
  func.func @transform_1(%arg0: i32, %arg1: i32, %arg2: i32) -> (i32, i32) {
    %c0_i32 = arith.constant 0 : i32
    return %arg2, %arg1 : i32, i32
  }
  func.func @transform_2(%arg0: i32, %arg1: i32, %arg2: i32) -> (i32, i32) {
    %c0_i32 = arith.constant 0 : i32
    return %arg0, %arg1 : i32, i32
  }
  func.func @transform_3(%arg0: i32, %arg1: i32, %arg2: i32) -> (i32, i32, i32) {
    %c0_i32 = arith.constant 0 : i32
    %c0_i32_0 = arith.constant 0 : i32
    return %arg0, %c0_i32, %arg1 : i32, i32, i32
  }
}

module attributes {stable_mosaic.version = 11 : i64} {
  func.func @_conv_matmul_kernel(%arg0: i32, %arg1: i32, %arg2: i32, %arg3: memref<56x1024xbf16, #tpu.memory_space<vmem>>, %arg4: memref<1024x128xbf16, #tpu.memory_space<vmem>>, %arg5: memref<1x128xf32, #tpu.memory_space<vmem>>, %arg6: memref<56x128xf32, #tpu.memory_space<vmem>>, %arg7: memref<56x128xf32, #tpu.memory_space<vmem>>) attributes {dimension_semantics = [#tpu.dimension_semantics<parallel>, #tpu.dimension_semantics<parallel>, #tpu.dimension_semantics<arbitrary>], iteration_bounds = array<i64: 1, 1, 1>, scalar_prefetch = 0 : i64, scratch_operands = 1 : i64, tpu.core_type = #tpu.core_type<tc>, window_params = [{transform_indices = @transform_0, window_bounds = array<i64: 56, 1024>}, {transform_indices = @transform_1, window_bounds = array<i64: 1024, 128>}, {transform_indices = @transform_2, window_bounds = array<i64: 1, 128>}, {transform_indices = @transform_3, window_bounds = array<i64: 56, 128>}]} {
    %c0_i32 = arith.constant 0 : i32
    %0 = arith.cmpi eq, %arg2, %c0_i32 : i32
    %1 = arith.extui %0 : i1 to i32
    %c0_i32_0 = arith.constant 0 : i32
    %2 = arith.cmpi ne, %1, %c0_i32_0 : i32
    scf.if %2 {
      %cst_10 = arith.constant 0.000000e+00 : f32
      %12 = vector.broadcast %cst_10 : f32 to vector<56x128xf32>
      %c0_11 = arith.constant 0 : index
      %c0_12 = arith.constant 0 : index
      %13 = vector.load %arg7[%c0_11, %c0_12] : memref<56x128xf32, #tpu.memory_space<vmem>>, vector<56x128xf32>
      tpu.vector_store %arg7[%c0_11, %c0_12], %12 {strides = array<i32>} : memref<56x128xf32, #tpu.memory_space<vmem>>, vector<56x128xf32>,
    } else {
    }
    %c0 = arith.constant 0 : index
    %c0_1 = arith.constant 0 : index
    %3 = vector.load %arg7[%c0, %c0_1] : memref<56x128xf32, #tpu.memory_space<vmem>>, vector<56x128xf32>
    %c0_2 = arith.constant 0 : index
    %c0_3 = arith.constant 0 : index
    %4 = vector.load %arg3[%c0_2, %c0_3] : memref<56x1024xbf16, #tpu.memory_space<vmem>>, vector<56x1024xbf16>
    %c0_4 = arith.constant 0 : index
    %c0_5 = arith.constant 0 : index
    %5 = vector.load %arg4[%c0_4, %c0_5] : memref<1024x128xbf16, #tpu.memory_space<vmem>>, vector<1024x128xbf16>
    %cst = arith.constant dense<0.000000e+00> : vector<56x128xf32>
    %6 = tpu.matmul %4, %5, %cst {dimension_numbers = #tpu.dot_dimension_numbers<[1], [0], [0], [1], [0, 0, 1, 1], [], []>} : vector<56x1024xbf16>, vector<1024x128xbf16>, vector<56x128xf32> -> vector<56x128xf32>
    %7 = arith.addf %3, %6 : vector<56x128xf32>
    %c0_6 = arith.constant 0 : index
    %c0_7 = arith.constant 0 : index
    %8 = vector.load %arg7[%c0_6, %c0_7] : memref<56x128xf32, #tpu.memory_space<vmem>>, vector<56x128xf32>
    tpu.vector_store %arg7[%c0_6, %c0_7], %7 {strides = array<i32>} : memref<56x128xf32, #tpu.memory_space<vmem>>, vector<56x128xf32>,
    %c0_i32_8 = arith.constant 0 : i32
    %9 = arith.cmpi eq, %arg2, %c0_i32_8 : i32
    %10 = arith.extui %9 : i1 to i32
    %c0_i32_9 = arith.constant 0 : i32
    %11 = arith.cmpi ne, %10, %c0_i32_9 : i32
    scf.if %11 {
      %c0_10 = arith.constant 0 : index
      %c0_11 = arith.constant 0 : index
      %12 = vector.load %arg7[%c0_10, %c0_11] : memref<56x128xf32, #tpu.memory_space<vmem>>, vector<56x128xf32>
      %c0_12 = arith.constant 0 : index
      %c0_13 = arith.constant 0 : index
      %13 = vector.load %arg5[%c0_12, %c0_13] : memref<1x128xf32, #tpu.memory_space<vmem>>, vector<1x128xf32>
      %14 = vector.broadcast %13 : vector<1x128xf32> to vector<56x128xf32>
      %15 = arith.addf %12, %14 : vector<56x128xf32>
      %c0_14 = arith.constant 0 : index
      %c0_15 = arith.constant 0 : index
      %16 = vector.load %arg6[%c0_14, %c0_15] : memref<56x128xf32, #tpu.memory_space<vmem>>, vector<56x128xf32>
      tpu.vector_store %arg6[%c0_14, %c0_15], %15 {strides = array<i32>} : memref<56x128xf32, #tpu.memory_space<vmem>>, vector<56x128xf32>,
    } else {
    }
    return
  }
  func.func @transform_0(%arg0: i32, %arg1: i32, %arg2: i32) -> (i32, i32) {
    %c0_i32 = arith.constant 0 : i32
    return %arg0, %arg2 : i32, i32
  }
  func.func @transform_1(%arg0: i32, %arg1: i32, %arg2: i32) -> (i32, i32) {
    %c0_i32 = arith.constant 0 : i32
    return %arg2, %arg1 : i32, i32
  }
  func.func @transform_2(%arg0: i32, %arg1: i32, %arg2: i32) -> (i32, i32) {
    %c0_i32 = arith.constant 0 : i32
    %c0_i32_0 = arith.constant 0 : i32
    return %c0_i32, %arg1 : i32, i32
  }
  func.func @transform_3(%arg0: i32, %arg1: i32, %arg2: i32) -> (i32, i32) {
    %c0_i32 = arith.constant 0 : i32
    return %arg0, %arg1 : i32, i32
  }
}

</mosaic_0001>

<llo_original>
// kernel: _lambda_.5
$region0: #{_lambda_.5}
  #allocation0 [shape = 'u32[]', space=smem, size = 0x4, offset = 0x4, fixed_abs, tag = 'smem constant byte address 0x4 - core index']
  #allocation1 [shape = 'u32[72,128]{1,0:T(1,128)}', space=vmem, size = 0x9000, scoped, tag = 'internal scratch']
  #allocation2 [shape = 'f32[168,128]{1,0:T(8,128)}', space=vmem, size = 0x15000, scoped, tag = 'scratch operand']
  %s0 = inlined_call_operand.vmem [shape: bf16[168,128], index: 0, kind: input, shape index: {}]
  %s1 = inlined_call_operand.vmem [shape: bf16[128,128], index: 1, kind: input, shape index: {}]
  %s2 = inlined_call_operand.vmem [shape: f32[1,128], index: 2, kind: input, shape index: {}]
  %s3 = inlined_call_operand.vmem [shape: bf16[168,128], index: 3, kind: output, shape index: {}]
  %s4 = sld [smem:[#allocation0]]
  $region30: #{_lambda_.5} parent=0
    _
  %s6 = ssub.s32 1, %s4
  %s7 = scalar_select 0, %s6, %s4
  // Predicated region
  $region2: #{_lambda_.5} parent=0 // pred_check
    _
  $region3: #{_lambda_.5} parent=0 // pred_check_branch
    %9 = sbr.rel (0) target = $region5
  $region4: #{_lambda_.5} parent=0 // pred_region
    _
  $region5: #{_lambda_.5} parent=0 // pred_fallthru
    _
  // Predicated region
  $region6: #{_lambda_.5} parent=0 // pred_check
    _
  $region7: #{_lambda_.5} parent=0 // pred_check_branch
    %11 = sbr.rel (0) target = $region9
  $region8: #{_lambda_.5} parent=0 // pred_region
    _
  $region9: #{_lambda_.5} parent=0 // pred_fallthru
    _
  // Predicated region
  $region10: #{_lambda_.5} parent=0 // pred_check
    _
  $region11: #{_lambda_.5} parent=0 // pred_check_branch
    %13 = sbr.rel (0) target = $region13
  $region12: #{_lambda_.5} parent=0 // pred_region
    _
  $region13: #{_lambda_.5} parent=0 // pred_fallthru
    _
  %p14 = scmp.eq.s32.totalorder 0, 0
  // Predicated region
  $region14: #{_lambda_.5} parent=0 // pred_check
    %p15 = pneg %p14
  $region15: #{_lambda_.5} parent=0 // pred_check_branch
    %17 = sbr.rel (%p15) target = $region17
  $region16: #{_lambda_.5} parent=0 // pred_region
    %18 = vst [vmem:[#allocation2] sm:$0xff] 0.0
    %19 = vst [vmem:[#allocation2 + $0x8] sm:$0xff] 0.0
    %20 = vst [vmem:[#allocation2 + $0x10] sm:$0xff] 0.0
    %21 = vst [vmem:[#allocation2 + $0x18] sm:$0xff] 0.0
    %22 = vst [vmem:[#allocation2 + $0x20] sm:$0xff] 0.0
    %23 = vst [vmem:[#allocation2 + $0x28] sm:$0xff] 0.0
    %24 = vst [vmem:[#allocation2 + $0x30] sm:$0xff] 0.0
    %25 = vst [vmem:[#allocation2 + $0x38] sm:$0xff] 0.0
    %26 = vst [vmem:[#allocation2 + $0x40] sm:$0xff] 0.0
    %27 = vst [vmem:[#allocation2 + $0x48] sm:$0xff] 0.0
    %28 = vst [vmem:[#allocation2 + $0x50] sm:$0xff] 0.0
    %29 = vst [vmem:[#allocation2 + $0x58] sm:$0xff] 0.0
    %30 = vst [vmem:[#allocation2 + $0x60] sm:$0xff] 0.0
    %31 = vst [vmem:[#allocation2 + $0x68] sm:$0xff] 0.0
    %32 = vst [vmem:[#allocation2 + $0x70] sm:$0xff] 0.0
    %33 = vst [vmem:[#allocation2 + $0x78] sm:$0xff] 0.0
    %34 = vst [vmem:[#allocation2 + $0x80] sm:$0xff] 0.0
    %35 = vst [vmem:[#allocation2 + $0x88] sm:$0xff] 0.0
    %36 = vst [vmem:[#allocation2 + $0x90] sm:$0xff] 0.0
    %37 = vst [vmem:[#allocation2 + $0x98] sm:$0xff] 0.0
    %38 = vst [vmem:[#allocation2 + $0xa0] sm:$0xff] 0.0
  $region17: #{_lambda_.5} parent=0 // pred_fallthru
    _
  %v39 = vld [vmem:[#allocation2] sm:$0xff]
  %v40 = vld [vmem:[#allocation2 + $0x8] sm:$0xff]
  %v41 = vld [vmem:[#allocation2 + $0x10] sm:$0xff]
  %v42 = vld [vmem:[#allocation2 + $0x18] sm:$0xff]
  %v43 = vld [vmem:[#allocation2 + $0x20] sm:$0xff]
  %v44 = vld [vmem:[#allocation2 + $0x28] sm:$0xff]
  %v45 = vld [vmem:[#allocation2 + $0x30] sm:$0xff]
  %v46 = vld [vmem:[#allocation2 + $0x38] sm:$0xff]
  %v47 = vld [vmem:[#allocation2 + $0x40] sm:$0xff]
  %v48 = vld [vmem:[#allocation2 + $0x48] sm:$0xff]
  %v49 = vld [vmem:[#allocation2 + $0x50] sm:$0xff]
  %v50 = vld [vmem:[#allocation2 + $0x58] sm:$0xff]
  %v51 = vld [vmem:[#allocation2 + $0x60] sm:$0xff]
  %v52 = vld [vmem:[#allocation2 + $0x68] sm:$0xff]
  %v53 = vld [vmem:[#allocation2 + $0x70] sm:$0xff]
  %v54 = vld [vmem:[#allocation2 + $0x78] sm:$0xff]
  %v55 = vld [vmem:[#allocation2 + $0x80] sm:$0xff]
  %v56 = vld [vmem:[#allocation2 + $0x88] sm:$0xff]
  %v57 = vld [vmem:[#allocation2 + $0x90] sm:$0xff]
  %v58 = vld [vmem:[#allocation2 + $0x98] sm:$0xff]
  %v59 = vld [vmem:[#allocation2 + $0xa0] sm:$0xff]
  %v60 = vld [vmem:[%s0] sm:$0xf]
  %v61 = vld [vmem:[%s0 + $0x4] sm:$0xf]
  %v62 = vld [vmem:[%s0 + $0x8] sm:$0xf]
  %v63 = vld [vmem:[%s0 + $0xc] sm:$0xf]
  %v64 = vld [vmem:[%s0 + $0x10] sm:$0xf]
  %v65 = vld [vmem:[%s0 + $0x14] sm:$0xf]
  %v66 = vld [vmem:[%s0 + $0x18] sm:$0xf]
  %v67 = vld [vmem:[%s0 + $0x1c] sm:$0xf]
  %v68 = vld [vmem:[%s0 + $0x20] sm:$0xf]
  %v69 = vld [vmem:[%s0 + $0x24] sm:$0xf]
  %v70 = vld [vmem:[%s0 + $0x28] sm:$0xf]
  %v71 = vld [vmem:[%s0 + $0x2c] sm:$0xf]
  %v72 = vld [vmem:[%s0 + $0x30] sm:$0xf]
  %v73 = vld [vmem:[%s0 + $0x34] sm:$0xf]
  %v74 = vld [vmem:[%s0 + $0x38] sm:$0xf]
  %v75 = vld [vmem:[%s0 + $0x3c] sm:$0xf]
  %v76 = vld [vmem:[%s0 + $0x40] sm:$0xf]
  %v77 = vld [vmem:[%s0 + $0x44] sm:$0xf]
  %v78 = vld [vmem:[%s0 + $0x48] sm:$0xf]
  %v79 = vld [vmem:[%s0 + $0x4c] sm:$0xf]
  %v80 = vld [vmem:[%s0 + $0x50] sm:$0xf]
  %v81 = vld [vmem:[%s1] sm:$0xf]
  %v82 = vld [vmem:[%s1 + $0x4] sm:$0xf]
  %v83 = vld [vmem:[%s1 + $0x8] sm:$0xf]
  %v84 = vld [vmem:[%s1 + $0xc] sm:$0xf]
  %v85 = vld [vmem:[%s1 + $0x10] sm:$0xf]
  %v86 = vld [vmem:[%s1 + $0x14] sm:$0xf]
  %v87 = vld [vmem:[%s1 + $0x18] sm:$0xf]
  %v88 = vld [vmem:[%s1 + $0x1c] sm:$0xf]
  %v89 = vld [vmem:[%s1 + $0x20] sm:$0xf]
  %v90 = vld [vmem:[%s1 + $0x24] sm:$0xf]
  %v91 = vld [vmem:[%s1 + $0x28] sm:$0xf]
  %v92 = vld [vmem:[%s1 + $0x2c] sm:$0xf]
  %v93 = vld [vmem:[%s1 + $0x30] sm:$0xf]
  %v94 = vld [vmem:[%s1 + $0x34] sm:$0xf]
  %v95 = vld [vmem:[%s1 + $0x38] sm:$0xf]
  %v96 = vld [vmem:[%s1 + $0x3c] sm:$0xf]
  %v118 = vunpack.c.l.b16 %v60
  %v119 = vunpack.c.l.b16 %v61
  %v120 = vunpack.c.l.b16 %v62
  %v121 = vunpack.c.l.b16 %v63
  %v122 = vunpack.c.l.b16 %v64
  %v123 = vunpack.c.l.b16 %v65
  %v124 = vunpack.c.l.b16 %v66
  %v125 = vunpack.c.l.b16 %v67
  %v126 = vunpack.c.l.b16 %v68
  %v127 = vunpack.c.l.b16 %v69
  %v128 = vunpack.c.l.b16 %v70
  %v129 = vunpack.c.l.b16 %v71
  %v130 = vunpack.c.l.b16 %v72
  %v131 = vunpack.c.l.b16 %v73
  %v132 = vunpack.c.l.b16 %v74
  %v133 = vunpack.c.l.b16 %v75
  %v134 = vunpack.c.l.b16 %v76
  %v135 = vunpack.c.l.b16 %v77
  %v136 = vunpack.c.l.b16 %v78
  %v137 = vunpack.c.l.b16 %v79
  %v138 = vunpack.c.l.b16 %v80
  %v139 = vpack.c.b16 %v119, %v118
  %v140 = vpack.c.b16 %v121, %v120
  %v141 = vpack.c.b16 %v123, %v122
  %v142 = vpack.c.b16 %v125, %v124
  %v143 = vpack.c.b16 %v127, %v126
  %v144 = vpack.c.b16 %v129, %v128
  %v145 = vpack.c.b16 %v131, %v130
  %v146 = vpack.c.b16 %v133, %v132
  %v147 = vpack.c.b16 %v135, %v134
  %v148 = vpack.c.b16 %v137, %v136
  %v149 = vpack.c.b16 %v138, %v138
  %v177 = vunpack.c.l.b16 %v81
  %v178 = vunpack.c.l.b16 %v82
  %v179 = vunpack.c.l.b16 %v83
  %v180 = vunpack.c.l.b16 %v84
  %v181 = vunpack.c.l.b16 %v85
  %v182 = vunpack.c.l.b16 %v86
  %v183 = vunpack.c.l.b16 %v87
  %v184 = vunpack.c.l.b16 %v88
  %v185 = vunpack.c.l.b16 %v89
  %v186 = vunpack.c.l.b16 %v90
  %v187 = vunpack.c.l.b16 %v91
  %v188 = vunpack.c.l.b16 %v92
  %v189 = vunpack.c.l.b16 %v93
  %v190 = vunpack.c.l.b16 %v94
  %v191 = vunpack.c.l.b16 %v95
  %v192 = vunpack.c.l.b16 %v96
  %v193 = vpack.c.b16 %v178, %v177
  %v194 = vpack.c.b16 %v180, %v179
  %v195 = vpack.c.b16 %v182, %v181
  %v196 = vpack.c.b16 %v184, %v183
  %v197 = vpack.c.b16 %v186, %v185
  %v198 = vpack.c.b16 %v188, %v187
  %v199 = vpack.c.b16 %v190, %v189
  %v200 = vpack.c.b16 %v192, %v191
  %209 = vmatpush.bf16.msra.mxu0 %v200
  %210 = vmatpush.bf16.msra.mxu0 %v199
  %211 = vmatpush.bf16.msra.mxu0 %v198
  %212 = vmatpush.bf16.msra.mxu0 %v197
  %213 = vmatpush.bf16.msra.mxu0 %v196
  %214 = vmatpush.bf16.msra.mxu0 %v195
  %215 = vmatpush.bf16.msra.mxu0 %v194
  %216 = vmatpush.bf16.msra.mxu0 %v193
  %217 = vmatmul.bf16.gmra.mxu0 %v139
  %v218 = vpop.f32.mrf.mxu0
  %v219 = vadd.f32 0.0, %v218
  %v220 = vpop.f32.mrf.mxu0
  %v221 = vadd.f32 0.0, %v220
  %222 = vmatmul.bf16.gmra.mxu0 %v140
  %v223 = vpop.f32.mrf.mxu0
  %v224 = vadd.f32 0.0, %v223
  %v225 = vpop.f32.mrf.mxu0
  %v226 = vadd.f32 0.0, %v225
  %227 = vmatmul.bf16.gmra.mxu0 %v141
  %v228 = vpop.f32.mrf.mxu0
  %v229 = vadd.f32 0.0, %v228
  %v230 = vpop.f32.mrf.mxu0
  %v231 = vadd.f32 0.0, %v230
  %232 = vmatmul.bf16.gmra.mxu0 %v142
  %v233 = vpop.f32.mrf.mxu0
  %v234 = vadd.f32 0.0, %v233
  %v235 = vpop.f32.mrf.mxu0
  %v236 = vadd.f32 0.0, %v235
  %237 = vmatmul.bf16.gmra.mxu0 %v143
  %v238 = vpop.f32.mrf.mxu0
  %v239 = vadd.f32 0.0, %v238
  %v240 = vpop.f32.mrf.mxu0
  %v241 = vadd.f32 0.0, %v240
  %242 = vmatmul.bf16.gmra.mxu0 %v144
  %v243 = vpop.f32.mrf.mxu0
  %v244 = vadd.f32 0.0, %v243
  %v245 = vpop.f32.mrf.mxu0
  %v246 = vadd.f32 0.0, %v245
  %247 = vmatmul.bf16.gmra.mxu0 %v145
  %v248 = vpop.f32.mrf.mxu0
  %v249 = vadd.f32 0.0, %v248
  %v250 = vpop.f32.mrf.mxu0
  %v251 = vadd.f32 0.0, %v250
  %252 = vmatmul.bf16.gmra.mxu0 %v146
  %v253 = vpop.f32.mrf.mxu0
  %v254 = vadd.f32 0.0, %v253
  %v255 = vpop.f32.mrf.mxu0
  %v256 = vadd.f32 0.0, %v255
  %257 = vmatmul.bf16.gmra.mxu0 %v147
  %v258 = vpop.f32.mrf.mxu0
  %v259 = vadd.f32 0.0, %v258
  %v260 = vpop.f32.mrf.mxu0
  %v261 = vadd.f32 0.0, %v260
  %262 = vmatmul.bf16.gmra.mxu0 %v148
  %v263 = vpop.f32.mrf.mxu0
  %v264 = vadd.f32 0.0, %v263
  %v265 = vpop.f32.mrf.mxu0
  %v266 = vadd.f32 0.0, %v265
  %267 = vmatmul.bf16.gmra.mxu0 %v149
  %v268 = vpop.f32.mrf.mxu0
  %v269 = vadd.f32 0.0, %v268
  %v270 = vpop.f32.mrf.mxu0
  %271 = vdwg.mxu0
  %v272 = vadd.f32 %v39, %v219
  %v273 = vadd.f32 %v40, %v221
  %v274 = vadd.f32 %v41, %v224
  %v275 = vadd.f32 %v42, %v226
  %v276 = vadd.f32 %v43, %v229
  %v277 = vadd.f32 %v44, %v231
  %v278 = vadd.f32 %v45, %v234
  %v279 = vadd.f32 %v46, %v236
  %v280 = vadd.f32 %v47, %v239
  %v281 = vadd.f32 %v48, %v241
  %v282 = vadd.f32 %v49, %v244
  %v283 = vadd.f32 %v50, %v246
  %v284 = vadd.f32 %v51, %v249
  %v285 = vadd.f32 %v52, %v251
  %v286 = vadd.f32 %v53, %v254
  %v287 = vadd.f32 %v54, %v256
  %v288 = vadd.f32 %v55, %v259
  %v289 = vadd.f32 %v56, %v261
  %v290 = vadd.f32 %v57, %v264
  %v291 = vadd.f32 %v58, %v266
  %v292 = vadd.f32 %v59, %v269
  %293 = vst [vmem:[#allocation2] sm:$0xff] %v272
  %294 = vst [vmem:[#allocation2 + $0x8] sm:$0xff] %v273
  %295 = vst [vmem:[#allocation2 + $0x10] sm:$0xff] %v274
  %296 = vst [vmem:[#allocation2 + $0x18] sm:$0xff] %v275
  %297 = vst [vmem:[#allocation2 + $0x20] sm:$0xff] %v276
  %298 = vst [vmem:[#allocation2 + $0x28] sm:$0xff] %v277
  %299 = vst [vmem:[#allocation2 + $0x30] sm:$0xff] %v278
  %300 = vst [vmem:[#allocation2 + $0x38] sm:$0xff] %v279
  %301 = vst [vmem:[#allocation2 + $0x40] sm:$0xff] %v280
  %302 = vst [vmem:[#allocation2 + $0x48] sm:$0xff] %v281
  %303 = vst [vmem:[#allocation2 + $0x50] sm:$0xff] %v282
  %304 = vst [vmem:[#allocation2 + $0x58] sm:$0xff] %v283
  %305 = vst [vmem:[#allocation2 + $0x60] sm:$0xff] %v284
  %306 = vst [vmem:[#allocation2 + $0x68] sm:$0xff] %v285
  %307 = vst [vmem:[#allocation2 + $0x70] sm:$0xff] %v286
  %308 = vst [vmem:[#allocation2 + $0x78] sm:$0xff] %v287
  %309 = vst [vmem:[#allocation2 + $0x80] sm:$0xff] %v288
  %310 = vst [vmem:[#allocation2 + $0x88] sm:$0xff] %v289
  %311 = vst [vmem:[#allocation2 + $0x90] sm:$0xff] %v290
  %312 = vst [vmem:[#allocation2 + $0x98] sm:$0xff] %v291
  %313 = vst [vmem:[#allocation2 + $0xa0] sm:$0xff] %v292
  // Predicated region
  $region18: #{_lambda_.5} parent=0 // pred_check
    %p314 = pneg %p14
  $region19: #{_lambda_.5} parent=0 // pred_check_branch
    %316 = sbr.rel (%p314) target = $region21
  $region20: #{_lambda_.5} parent=0 // pred_region
    %v317 = vld [vmem:[#allocation2] sm:$0xff]
    %v318 = vld [vmem:[#allocation2 + $0x8] sm:$0xff]
    %v319 = vld [vmem:[#allocation2 + $0x10] sm:$0xff]
    %v320 = vld [vmem:[#allocation2 + $0x18] sm:$0xff]
    %v321 = vld [vmem:[#allocation2 + $0x20] sm:$0xff]
    %v322 = vld [vmem:[#allocation2 + $0x28] sm:$0xff]
    %v323 = vld [vmem:[#allocation2 + $0x30] sm:$0xff]
    %v324 = vld [vmem:[#allocation2 + $0x38] sm:$0xff]
    %v325 = vld [vmem:[#allocation2 + $0x40] sm:$0xff]
    %v326 = vld [vmem:[#allocation2 + $0x48] sm:$0xff]
    %v327 = vld [vmem:[#allocation2 + $0x50] sm:$0xff]
    %v328 = vld [vmem:[#allocation2 + $0x58] sm:$0xff]
    %v329 = vld [vmem:[#allocation2 + $0x60] sm:$0xff]
    %v330 = vld [vmem:[#allocation2 + $0x68] sm:$0xff]
    %v331 = vld [vmem:[#allocation2 + $0x70] sm:$0xff]
    %v332 = vld [vmem:[#allocation2 + $0x78] sm:$0xff]
    %v333 = vld [vmem:[#allocation2 + $0x80] sm:$0xff]
    %v334 = vld [vmem:[#allocation2 + $0x88] sm:$0xff]
    %v335 = vld [vmem:[#allocation2 + $0x90] sm:$0xff]
    %v336 = vld [vmem:[#allocation2 + $0x98] sm:$0xff]
    %v337 = vld [vmem:[#allocation2 + $0xa0] sm:$0xff]
    %v338 = vld [vmem:[%s2] sm:$0x1]
    %v340 = vperm.slane %v338, 0
    %v342 = vadd.f32 %v317, %v340
    %v343 = vadd.f32 %v318, %v340
    %v344 = vadd.f32 %v319, %v340
    %v345 = vadd.f32 %v320, %v340
    %v346 = vadd.f32 %v321, %v340
    %v347 = vadd.f32 %v322, %v340
    %v348 = vadd.f32 %v323, %v340
    %v349 = vadd.f32 %v324, %v340
    %v350 = vadd.f32 %v325, %v340
    %v351 = vadd.f32 %v326, %v340
    %v352 = vadd.f32 %v327, %v340
    %v353 = vadd.f32 %v328, %v340
    %v354 = vadd.f32 %v329, %v340
    %v355 = vadd.f32 %v330, %v340
    %v356 = vadd.f32 %v331, %v340
    %v357 = vadd.f32 %v332, %v340
    %v358 = vadd.f32 %v333, %v340
    %v359 = vadd.f32 %v334, %v340
    %v360 = vadd.f32 %v335, %v340
    %v361 = vadd.f32 %v336, %v340
    %v362 = vadd.f32 %v337, %v340
    %vm363 = vcmp.ge.f32.partialorder %v342, 0.0
    %vm364 = vcmp.ge.f32.partialorder %v343, 0.0
    %vm365 = vcmp.ge.f32.partialorder %v344, 0.0
    %vm366 = vcmp.ge.f32.partialorder %v345, 0.0
    %vm367 = vcmp.ge.f32.partialorder %v346, 0.0
    %vm368 = vcmp.ge.f32.partialorder %v347, 0.0
    %vm369 = vcmp.ge.f32.partialorder %v348, 0.0
    %vm370 = vcmp.ge.f32.partialorder %v349, 0.0
    %vm371 = vcmp.ge.f32.partialorder %v350, 0.0
    %vm372 = vcmp.ge.f32.partialorder %v351, 0.0
    %vm373 = vcmp.ge.f32.partialorder %v352, 0.0
    %vm374 = vcmp.ge.f32.partialorder %v353, 0.0
    %vm375 = vcmp.ge.f32.partialorder %v354, 0.0
    %vm376 = vcmp.ge.f32.partialorder %v355, 0.0
    %vm377 = vcmp.ge.f32.partialorder %v356, 0.0
    %vm378 = vcmp.ge.f32.partialorder %v357, 0.0
    %vm379 = vcmp.ge.f32.partialorder %v358, 0.0
    %vm380 = vcmp.ge.f32.partialorder %v359, 0.0
    %vm381 = vcmp.ge.f32.partialorder %v360, 0.0
    %vm382 = vcmp.ge.f32.partialorder %v361, 0.0
    %vm383 = vcmp.ge.f32.partialorder %v362, 0.0
    %v384 = vmul.f32 %v342, 0.2
    %v385 = vmul.f32 %v343, 0.2
    %v386 = vmul.f32 %v344, 0.2
    %v387 = vmul.f32 %v345, 0.2
    %v388 = vmul.f32 %v346, 0.2
    %v389 = vmul.f32 %v347, 0.2
    %v390 = vmul.f32 %v348, 0.2
    %v391 = vmul.f32 %v349, 0.2
    %v392 = vmul.f32 %v350, 0.2
    %v393 = vmul.f32 %v351, 0.2
    %v394 = vmul.f32 %v352, 0.2
    %v395 = vmul.f32 %v353, 0.2
    %v396 = vmul.f32 %v354, 0.2
    %v397 = vmul.f32 %v355, 0.2
    %v398 = vmul.f32 %v356, 0.2
    %v399 = vmul.f32 %v357, 0.2
    %v400 = vmul.f32 %v358, 0.2
    %v401 = vmul.f32 %v359, 0.2
    %v402 = vmul.f32 %v360, 0.2
    %v403 = vmul.f32 %v361, 0.2
    %v404 = vmul.f32 %v362, 0.2
    %v405 = vsel %vm363, %v342, %v384
    %v406 = vsel %vm364, %v343, %v385
    %v407 = vsel %vm365, %v344, %v386
    %v408 = vsel %vm366, %v345, %v387
    %v409 = vsel %vm367, %v346, %v388
    %v410 = vsel %vm368, %v347, %v389
    %v411 = vsel %vm369, %v348, %v390
    %v412 = vsel %vm370, %v349, %v391
    %v413 = vsel %vm371, %v350, %v392
    %v414 = vsel %vm372, %v351, %v393
    %v415 = vsel %vm373, %v352, %v394
    %v416 = vsel %vm374, %v353, %v395
    %v417 = vsel %vm375, %v354, %v396
    %v418 = vsel %vm376, %v355, %v397
    %v419 = vsel %vm377, %v356, %v398
    %v420 = vsel %vm378, %v357, %v399
    %v421 = vsel %vm379, %v358, %v400
    %v422 = vsel %vm380, %v359, %v401
    %v423 = vsel %vm381, %v360, %v402
    %v424 = vsel %vm382, %v361, %v403
    %v425 = vsel %vm383, %v362, %v404
    %v426 = vpack.c.bf16 %v405, %v405
    %v427 = vpack.c.bf16 %v406, %v406
    %v428 = vpack.c.bf16 %v407, %v407
    %v429 = vpack.c.bf16 %v408, %v408
    %v430 = vpack.c.bf16 %v409, %v409
    %v431 = vpack.c.bf16 %v410, %v410
    %v432 = vpack.c.bf16 %v411, %v411
    %v433 = vpack.c.bf16 %v412, %v412
    %v434 = vpack.c.bf16 %v413, %v413
    %v435 = vpack.c.bf16 %v414, %v414
    %v436 = vpack.c.bf16 %v415, %v415
    %v437 = vpack.c.bf16 %v416, %v416
    %v438 = vpack.c.bf16 %v417, %v417
    %v439 = vpack.c.bf16 %v418, %v418
    %v440 = vpack.c.bf16 %v419, %v419
    %v441 = vpack.c.bf16 %v420, %v420
    %v442 = vpack.c.bf16 %v421, %v421
    %v443 = vpack.c.bf16 %v422, %v422
    %v444 = vpack.c.bf16 %v423, %v423
    %v445 = vpack.c.bf16 %v424, %v424
    %v446 = vpack.c.bf16 %v425, %v425
    %447 = vst [vmem:[%s3] sm:$0xf] %v426
    %448 = vst [vmem:[%s3 + $0x4] sm:$0xf] %v427
    %449 = vst [vmem:[%s3 + $0x8] sm:$0xf] %v428
    %450 = vst [vmem:[%s3 + $0xc] sm:$0xf] %v429
    %451 = vst [vmem:[%s3 + $0x10] sm:$0xf] %v430
    %452 = vst [vmem:[%s3 + $0x14] sm:$0xf] %v431
    %453 = vst [vmem:[%s3 + $0x18] sm:$0xf] %v432
    %454 = vst [vmem:[%s3 + $0x1c] sm:$0xf] %v433
    %455 = vst [vmem:[%s3 + $0x20] sm:$0xf] %v434
    %456 = vst [vmem:[%s3 + $0x24] sm:$0xf] %v435
    %457 = vst [vmem:[%s3 + $0x28] sm:$0xf] %v436
    %458 = vst [vmem:[%s3 + $0x2c] sm:$0xf] %v437
    %459 = vst [vmem:[%s3 + $0x30] sm:$0xf] %v438
    %460 = vst [vmem:[%s3 + $0x34] sm:$0xf] %v439
    %461 = vst [vmem:[%s3 + $0x38] sm:$0xf] %v440
    %462 = vst [vmem:[%s3 + $0x3c] sm:$0xf] %v441
    %463 = vst [vmem:[%s3 + $0x40] sm:$0xf] %v442
    %464 = vst [vmem:[%s3 + $0x44] sm:$0xf] %v443
    %465 = vst [vmem:[%s3 + $0x48] sm:$0xf] %v444
    %466 = vst [vmem:[%s3 + $0x4c] sm:$0xf] %v445
    %467 = vst [vmem:[%s3 + $0x50] sm:$0xf] %v446
  $region21: #{_lambda_.5} parent=0 // pred_fallthru
    _
  // Predicated region
  $region22: #{_lambda_.5} parent=0 // pred_check
    _
  $region23: #{_lambda_.5} parent=0 // pred_check_branch
    %469 = sbr.rel (0) target = $region25
  $region24: #{_lambda_.5} parent=0 // pred_region
    _
  $region25: #{_lambda_.5} parent=0 // pred_fallthru
    _
  // Predicated region
  $region26: #{_lambda_.5} parent=0 // pred_check
    _
  $region27: #{_lambda_.5} parent=0 // pred_check_branch
    %471 = sbr.rel (0) target = $region29
  $region28: #{_lambda_.5} parent=0 // pred_region
    _
  $region29: #{_lambda_.5} parent=0 // pred_fallthru
    _

// kernel: _lambda_.6
$region0: #{_lambda_.6}
  #allocation0 [shape = 'u32[]', space=smem, size = 0x4, offset = 0x4, fixed_abs, tag = 'smem constant byte address 0x4 - core index']
  #allocation1 [shape = 'u32[72,128]{1,0:T(1,128)}', space=vmem, size = 0x9000, scoped, tag = 'internal scratch']
  #allocation2 [shape = 'f32[56,128]{1,0:T(8,128)}', space=vmem, size = 0x7000, scoped, tag = 'scratch operand']
  %s0 = inlined_call_operand.vmem [shape: bf16[56,128], index: 0, kind: input, shape index: {}]
  %s1 = inlined_call_operand.vmem [shape: bf16[128,128], index: 1, kind: input, shape index: {}]
  %s2 = inlined_call_operand.vmem [shape: bf16[56,128], index: 2, kind: output, shape index: {0}]
  %s3 = inlined_call_operand.vmem [shape: f32[1,2,128], index: 3, kind: output, shape index: {1}]
  %4 = xla_tuple %s2, %s3
  %s5 = sld [smem:[#allocation0]]
  $region34: #{_lambda_.6} parent=0
    _
  %s7 = ssub.s32 1, %s5
  %s8 = scalar_select 0, %s7, %s5
  // Predicated region
  $region2: #{_lambda_.6} parent=0 // pred_check
    _
  $region3: #{_lambda_.6} parent=0 // pred_check_branch
    %10 = sbr.rel (0) target = $region5
  $region4: #{_lambda_.6} parent=0 // pred_region
    _
  $region5: #{_lambda_.6} parent=0 // pred_fallthru
    _
  // Predicated region
  $region6: #{_lambda_.6} parent=0 // pred_check
    _
  $region7: #{_lambda_.6} parent=0 // pred_check_branch
    %12 = sbr.rel (0) target = $region9
  $region8: #{_lambda_.6} parent=0 // pred_region
    _
  $region9: #{_lambda_.6} parent=0 // pred_fallthru
    _
  %p13 = scmp.eq.s32.totalorder 0, 0
  // Predicated region
  $region10: #{_lambda_.6} parent=0 // pred_check
    %p14 = pneg %p13
  $region11: #{_lambda_.6} parent=0 // pred_check_branch
    %16 = sbr.rel (%p14) target = $region13
  $region12: #{_lambda_.6} parent=0 // pred_region
    %17 = vst [vmem:[#allocation2] sm:$0xff] 0.0
    %18 = vst [vmem:[#allocation2 + $0x8] sm:$0xff] 0.0
    %19 = vst [vmem:[#allocation2 + $0x10] sm:$0xff] 0.0
    %20 = vst [vmem:[#allocation2 + $0x18] sm:$0xff] 0.0
    %21 = vst [vmem:[#allocation2 + $0x20] sm:$0xff] 0.0
    %22 = vst [vmem:[#allocation2 + $0x28] sm:$0xff] 0.0
    %23 = vst [vmem:[#allocation2 + $0x30] sm:$0xff] 0.0
  $region13: #{_lambda_.6} parent=0 // pred_fallthru
    _
  %v24 = vld [vmem:[#allocation2] sm:$0xff]
  %v25 = vld [vmem:[#allocation2 + $0x8] sm:$0xff]
  %v26 = vld [vmem:[#allocation2 + $0x10] sm:$0xff]
  %v27 = vld [vmem:[#allocation2 + $0x18] sm:$0xff]
  %v28 = vld [vmem:[#allocation2 + $0x20] sm:$0xff]
  %v29 = vld [vmem:[#allocation2 + $0x28] sm:$0xff]
  %v30 = vld [vmem:[#allocation2 + $0x30] sm:$0xff]
  %v31 = vld [vmem:[%s0] sm:$0xf]
  %v32 = vld [vmem:[%s0 + $0x4] sm:$0xf]
  %v33 = vld [vmem:[%s0 + $0x8] sm:$0xf]
  %v34 = vld [vmem:[%s0 + $0xc] sm:$0xf]
  %v35 = vld [vmem:[%s0 + $0x10] sm:$0xf]
  %v36 = vld [vmem:[%s0 + $0x14] sm:$0xf]
  %v37 = vld [vmem:[%s0 + $0x18] sm:$0xf]
  %v38 = vld [vmem:[%s1] sm:$0xf]
  %v39 = vld [vmem:[%s1 + $0x4] sm:$0xf]
  %v40 = vld [vmem:[%s1 + $0x8] sm:$0xf]
  %v41 = vld [vmem:[%s1 + $0xc] sm:$0xf]
  %v42 = vld [vmem:[%s1 + $0x10] sm:$0xf]
  %v43 = vld [vmem:[%s1 + $0x14] sm:$0xf]
  %v44 = vld [vmem:[%s1 + $0x18] sm:$0xf]
  %v45 = vld [vmem:[%s1 + $0x1c] sm:$0xf]
  %v46 = vld [vmem:[%s1 + $0x20] sm:$0xf]
  %v47 = vld [vmem:[%s1 + $0x24] sm:$0xf]
  %v48 = vld [vmem:[%s1 + $0x28] sm:$0xf]
  %v49 = vld [vmem:[%s1 + $0x2c] sm:$0xf]
  %v50 = vld [vmem:[%s1 + $0x30] sm:$0xf]
  %v51 = vld [vmem:[%s1 + $0x34] sm:$0xf]
  %v52 = vld [vmem:[%s1 + $0x38] sm:$0xf]
  %v53 = vld [vmem:[%s1 + $0x3c] sm:$0xf]
  %v61 = vunpack.c.l.b16 %v31
  %v62 = vunpack.c.l.b16 %v32
  %v63 = vunpack.c.l.b16 %v33
  %v64 = vunpack.c.l.b16 %v34
  %v65 = vunpack.c.l.b16 %v35
  %v66 = vunpack.c.l.b16 %v36
  %v67 = vunpack.c.l.b16 %v37
  %v68 = vpack.c.b16 %v62, %v61
  %v69 = vpack.c.b16 %v64, %v63
  %v70 = vpack.c.b16 %v66, %v65
  %v71 = vpack.c.b16 %v67, %v67
  %v92 = vunpack.c.l.b16 %v38
  %v93 = vunpack.c.l.b16 %v39
  %v94 = vunpack.c.l.b16 %v40
  %v95 = vunpack.c.l.b16 %v41
  %v96 = vunpack.c.l.b16 %v42
  %v97 = vunpack.c.l.b16 %v43
  %v98 = vunpack.c.l.b16 %v44
  %v99 = vunpack.c.l.b16 %v45
  %v100 = vunpack.c.l.b16 %v46
  %v101 = vunpack.c.l.b16 %v47
  %v102 = vunpack.c.l.b16 %v48
  %v103 = vunpack.c.l.b16 %v49
  %v104 = vunpack.c.l.b16 %v50
  %v105 = vunpack.c.l.b16 %v51
  %v106 = vunpack.c.l.b16 %v52
  %v107 = vunpack.c.l.b16 %v53
  %v108 = vpack.c.b16 %v93, %v92
  %v109 = vpack.c.b16 %v95, %v94
  %v110 = vpack.c.b16 %v97, %v96
  %v111 = vpack.c.b16 %v99, %v98
  %v112 = vpack.c.b16 %v101, %v100
  %v113 = vpack.c.b16 %v103, %v102
  %v114 = vpack.c.b16 %v105, %v104
  %v115 = vpack.c.b16 %v107, %v106
  %124 = vmatpush.bf16.msra.mxu0 %v115
  %125 = vmatpush.bf16.msra.mxu0 %v114
  %126 = vmatpush.bf16.msra.mxu0 %v113
  %127 = vmatpush.bf16.msra.mxu0 %v112
  %128 = vmatpush.bf16.msra.mxu0 %v111
  %129 = vmatpush.bf16.msra.mxu0 %v110
  %130 = vmatpush.bf16.msra.mxu0 %v109
  %131 = vmatpush.bf16.msra.mxu0 %v108
  %132 = vmatmul.bf16.gmra.mxu0 %v68
  %v133 = vpop.f32.mrf.mxu0
  %v134 = vadd.f32 0.0, %v133
  %v135 = vpop.f32.mrf.mxu0
  %v136 = vadd.f32 0.0, %v135
  %137 = vmatmul.bf16.gmra.mxu0 %v69
  %v138 = vpop.f32.mrf.mxu0
  %v139 = vadd.f32 0.0, %v138
  %v140 = vpop.f32.mrf.mxu0
  %v141 = vadd.f32 0.0, %v140
  %142 = vmatmul.bf16.gmra.mxu0 %v70
  %v143 = vpop.f32.mrf.mxu0
  %v144 = vadd.f32 0.0, %v143
  %v145 = vpop.f32.mrf.mxu0
  %v146 = vadd.f32 0.0, %v145
  %147 = vmatmul.bf16.gmra.mxu0 %v71
  %v148 = vpop.f32.mrf.mxu0
  %v149 = vadd.f32 0.0, %v148
  %v150 = vpop.f32.mrf.mxu0
  %151 = vdwg.mxu0
  %v152 = vadd.f32 %v24, %v134
  %v153 = vadd.f32 %v25, %v136
  %v154 = vadd.f32 %v26, %v139
  %v155 = vadd.f32 %v27, %v141
  %v156 = vadd.f32 %v28, %v144
  %v157 = vadd.f32 %v29, %v146
  %v158 = vadd.f32 %v30, %v149
  %159 = vst [vmem:[#allocation2] sm:$0xff] %v152
  %160 = vst [vmem:[#allocation2 + $0x8] sm:$0xff] %v153
  %161 = vst [vmem:[#allocation2 + $0x10] sm:$0xff] %v154
  %162 = vst [vmem:[#allocation2 + $0x18] sm:$0xff] %v155
  %163 = vst [vmem:[#allocation2 + $0x20] sm:$0xff] %v156
  %164 = vst [vmem:[#allocation2 + $0x28] sm:$0xff] %v157
  %165 = vst [vmem:[#allocation2 + $0x30] sm:$0xff] %v158
  // Predicated region
  $region14: #{_lambda_.6} parent=0 // pred_check
    %p166 = pneg %p13
  $region15: #{_lambda_.6} parent=0 // pred_check_branch
    %168 = sbr.rel (%p166) target = $region17
  $region16: #{_lambda_.6} parent=0 // pred_region
    %v169 = vld [vmem:[#allocation2] sm:$0xff]
    %v170 = vld [vmem:[#allocation2 + $0x8] sm:$0xff]
    %v171 = vld [vmem:[#allocation2 + $0x10] sm:$0xff]
    %v172 = vld [vmem:[#allocation2 + $0x18] sm:$0xff]
    %v173 = vld [vmem:[#allocation2 + $0x20] sm:$0xff]
    %v174 = vld [vmem:[#allocation2 + $0x28] sm:$0xff]
    %v175 = vld [vmem:[#allocation2 + $0x30] sm:$0xff]
    %v176 = vpack.c.bf16 %v169, %v169
    %v177 = vpack.c.bf16 %v170, %v170
    %v178 = vpack.c.bf16 %v171, %v171
    %v179 = vpack.c.bf16 %v172, %v172
    %v180 = vpack.c.bf16 %v173, %v173
    %v181 = vpack.c.bf16 %v174, %v174
    %v182 = vpack.c.bf16 %v175, %v175
    %183 = vst [vmem:[%s2] sm:$0xf] %v176
    %184 = vst [vmem:[%s2 + $0x4] sm:$0xf] %v177
    %185 = vst [vmem:[%s2 + $0x8] sm:$0xf] %v178
    %186 = vst [vmem:[%s2 + $0xc] sm:$0xf] %v179
    %187 = vst [vmem:[%s2 + $0x10] sm:$0xf] %v180
    %188 = vst [vmem:[%s2 + $0x14] sm:$0xf] %v181
    %189 = vst [vmem:[%s2 + $0x18] sm:$0xf] %v182
    %v190 = vadd.f32 %v169, %v170
    %v191 = vadd.f32 %v190, %v171
    %v192 = vadd.f32 %v191, %v172
    %v193 = vadd.f32 %v192, %v173
    %v194 = vadd.f32 %v193, %v174
    %v195 = vadd.f32 %v194, %v175
    %v196 = vrot.slane %v195, 4
    %v197 = vadd.f32 %v195, %v196
    %v198 = vrot.slane %v197, 2
    %v199 = vadd.f32 %v197, %v198
    %v200 = vrot.slane %v199, 1
    %v201 = vadd.f32 %v199, %v200
    %202 = vst [vmem:[%s3] sm:$0x1] %v201
    %v203 = vmul.f32 %v169, %v169
    %v204 = vmul.f32 %v170, %v170
    %v205 = vmul.f32 %v171, %v171
    %v206 = vmul.f32 %v172, %v172
    %v207 = vmul.f32 %v173, %v173
    %v208 = vmul.f32 %v174, %v174
    %v209 = vmul.f32 %v175, %v175
    %v210 = vadd.f32 %v203, %v204
    %v211 = vadd.f32 %v210, %v205
    %v212 = vadd.f32 %v211, %v206
    %v213 = vadd.f32 %v212, %v207
    %v214 = vadd.f32 %v213, %v208
    %v215 = vadd.f32 %v214, %v209
    %v216 = vrot.slane %v215, 4
    %v217 = vadd.f32 %v215, %v216
    %v218 = vrot.slane %v217, 2
    %v219 = vadd.f32 %v217, %v218
    %v220 = vrot.slane %v219, 1
    %v221 = vadd.f32 %v219, %v220
    %222 = vst [vmem:[%s3 + $0x1] sm:$0x1] %v221
  $region17: #{_lambda_.6} parent=0 // pred_fallthru
    _
  // Predicated region
  $region18: #{_lambda_.6} parent=0 // pred_check
    _
  $region19: #{_lambda_.6} parent=0 // pred_check_branch
    %224 = sbr.rel (0) target = $region21
  $region20: #{_lambda_.6} parent=0 // pred_region
    _
  $region21: #{_lambda_.6} parent=0 // pred_fallthru
    _
  // Predicated region
  $region22: #{_lambda_.6} parent=0 // pred_check
    _
  $region23: #{_lambda_.6} parent=0 // pred_check_branch
    %226 = sbr.rel (0) target = $region25
  $region24: #{_lambda_.6} parent=0 // pred_region
    _
  $region25: #{_lambda_.6} parent=0 // pred_fallthru
    _
  // Predicated region
  $region26: #{_lambda_.6} parent=0 // pred_check
    _
  $region27: #{_lambda_.6} parent=0 // pred_check_branch
    %228 = sbr.rel (0) target = $region29
  $region28: #{_lambda_.6} parent=0 // pred_region
    _
  $region29: #{_lambda_.6} parent=0 // pred_fallthru
    _
  // Predicated region
  $region30: #{_lambda_.6} parent=0 // pred_check
    _
  $region31: #{_lambda_.6} parent=0 // pred_check_branch
    %230 = sbr.rel (0) target = $region33
  $region32: #{_lambda_.6} parent=0 // pred_region
    _
  $region33: #{_lambda_.6} parent=0 // pred_fallthru
    _

// kernel: _lambda_.7
$region0: #{_lambda_.7}
  #allocation0 [shape = 'u32[]', space=smem, size = 0x4, offset = 0x4, fixed_abs, tag = 'smem constant byte address 0x4 - core index']
  #allocation1 [shape = 'u32[72,128]{1,0:T(1,128)}', space=vmem, size = 0x9000, scoped, tag = 'internal scratch']
  #allocation2 [shape = 'f32[24,128]{1,0:T(8,128)}', space=vmem, size = 0x3000, scoped, tag = 'scratch operand']
  %s0 = inlined_call_operand.vmem [shape: bf16[24,256], index: 0, kind: input, shape index: {}]
  %s1 = inlined_call_operand.vmem [shape: bf16[256,128], index: 1, kind: input, shape index: {}]
  %s2 = inlined_call_operand.vmem [shape: bf16[24,128], index: 2, kind: output, shape index: {0}]
  %s3 = inlined_call_operand.vmem [shape: f32[1,2,128], index: 3, kind: output, shape index: {1}]
  %4 = xla_tuple %s2, %s3
  %s5 = sld [smem:[#allocation0]]
  $region34: #{_lambda_.7} parent=0
    _
  %s7 = ssub.s32 1, %s5
  %s8 = scalar_select 0, %s7, %s5
  // Predicated region
  $region2: #{_lambda_.7} parent=0 // pred_check
    _
  $region3: #{_lambda_.7} parent=0 // pred_check_branch
    %10 = sbr.rel (0) target = $region5
  $region4: #{_lambda_.7} parent=0 // pred_region
    _
  $region5: #{_lambda_.7} parent=0 // pred_fallthru
    _
  // Predicated region
  $region6: #{_lambda_.7} parent=0 // pred_check
    _
  $region7: #{_lambda_.7} parent=0 // pred_check_branch
    %12 = sbr.rel (0) target = $region9
  $region8: #{_lambda_.7} parent=0 // pred_region
    _
  $region9: #{_lambda_.7} parent=0 // pred_fallthru
    _
  %p13 = scmp.eq.s32.totalorder 0, 0
  // Predicated region
  $region10: #{_lambda_.7} parent=0 // pred_check
    %p14 = pneg %p13
  $region11: #{_lambda_.7} parent=0 // pred_check_branch
    %16 = sbr.rel (%p14) target = $region13
  $region12: #{_lambda_.7} parent=0 // pred_region
    %17 = vst [vmem:[#allocation2] sm:$0xff] 0.0
    %18 = vst [vmem:[#allocation2 + $0x8] sm:$0xff] 0.0
    %19 = vst [vmem:[#allocation2 + $0x10] sm:$0xff] 0.0
  $region13: #{_lambda_.7} parent=0 // pred_fallthru
    _
  %v20 = vld [vmem:[#allocation2] sm:$0xff]
  %v21 = vld [vmem:[#allocation2 + $0x8] sm:$0xff]
  %v22 = vld [vmem:[#allocation2 + $0x10] sm:$0xff]
  %v23 = vld [vmem:[%s0] sm:$0xff]
  %v24 = vld [vmem:[%s0 + $0x8] sm:$0xff]
  %v25 = vld [vmem:[%s0 + $0x10] sm:$0xff]
  %v26 = vld [vmem:[%s1] sm:$0xf]
  %v27 = vld [vmem:[%s1 + $0x4] sm:$0xf]
  %v28 = vld [vmem:[%s1 + $0x8] sm:$0xf]
  %v29 = vld [vmem:[%s1 + $0xc] sm:$0xf]
  %v30 = vld [vmem:[%s1 + $0x10] sm:$0xf]
  %v31 = vld [vmem:[%s1 + $0x14] sm:$0xf]
  %v32 = vld [vmem:[%s1 + $0x18] sm:$0xf]
  %v33 = vld [vmem:[%s1 + $0x1c] sm:$0xf]
  %v34 = vld [vmem:[%s1 + $0x20] sm:$0xf]
  %v35 = vld [vmem:[%s1 + $0x24] sm:$0xf]
  %v36 = vld [vmem:[%s1 + $0x28] sm:$0xf]
  %v37 = vld [vmem:[%s1 + $0x2c] sm:$0xf]
  %v38 = vld [vmem:[%s1 + $0x30] sm:$0xf]
  %v39 = vld [vmem:[%s1 + $0x34] sm:$0xf]
  %v40 = vld [vmem:[%s1 + $0x38] sm:$0xf]
  %v41 = vld [vmem:[%s1 + $0x3c] sm:$0xf]
  %v42 = vld [vmem:[%s1 + $0x40] sm:$0xf]
  %v43 = vld [vmem:[%s1 + $0x44] sm:$0xf]
  %v44 = vld [vmem:[%s1 + $0x48] sm:$0xf]
  %v45 = vld [vmem:[%s1 + $0x4c] sm:$0xf]
  %v46 = vld [vmem:[%s1 + $0x50] sm:$0xf]
  %v47 = vld [vmem:[%s1 + $0x54] sm:$0xf]
  %v48 = vld [vmem:[%s1 + $0x58] sm:$0xf]
  %v49 = vld [vmem:[%s1 + $0x5c] sm:$0xf]
  %v50 = vld [vmem:[%s1 + $0x60] sm:$0xf]
  %v51 = vld [vmem:[%s1 + $0x64] sm:$0xf]
  %v52 = vld [vmem:[%s1 + $0x68] sm:$0xf]
  %v53 = vld [vmem:[%s1 + $0x6c] sm:$0xf]
  %v54 = vld [vmem:[%s1 + $0x70] sm:$0xf]
  %v55 = vld [vmem:[%s1 + $0x74] sm:$0xf]
  %v56 = vld [vmem:[%s1 + $0x78] sm:$0xf]
  %v57 = vld [vmem:[%s1 + $0x7c] sm:$0xf]
  %v61 = vunpack.c.l.b16 %v23
  %v62 = vunpack.c.h.b16 %v23
  %v63 = vunpack.c.l.b16 %v24
  %v64 = vunpack.c.h.b16 %v24
  %v65 = vunpack.c.l.b16 %v25
  %v66 = vunpack.c.h.b16 %v25
  %v67 = vpack.c.b16 %v63, %v61
  %v68 = vpack.c.b16 %v64, %v62
  %v69 = vpack.c.b16 %v65, %v65
  %v70 = vpack.c.b16 %v66, %v66
  %v107 = vunpack.c.l.b16 %v26
  %v108 = vunpack.c.l.b16 %v27
  %v109 = vunpack.c.l.b16 %v28
  %v110 = vunpack.c.l.b16 %v29
  %v111 = vunpack.c.l.b16 %v30
  %v112 = vunpack.c.l.b16 %v31
  %v113 = vunpack.c.l.b16 %v32
  %v114 = vunpack.c.l.b16 %v33
  %v115 = vunpack.c.l.b16 %v34
  %v116 = vunpack.c.l.b16 %v35
  %v117 = vunpack.c.l.b16 %v36
  %v118 = vunpack.c.l.b16 %v37
  %v119 = vunpack.c.l.b16 %v38
  %v120 = vunpack.c.l.b16 %v39
  %v121 = vunpack.c.l.b16 %v40
  %v122 = vunpack.c.l.b16 %v41
  %v123 = vunpack.c.l.b16 %v42
  %v124 = vunpack.c.l.b16 %v43
  %v125 = vunpack.c.l.b16 %v44
  %v126 = vunpack.c.l.b16 %v45
  %v127 = vunpack.c.l.b16 %v46
  %v128 = vunpack.c.l.b16 %v47
  %v129 = vunpack.c.l.b16 %v48
  %v130 = vunpack.c.l.b16 %v49
  %v131 = vunpack.c.l.b16 %v50
  %v132 = vunpack.c.l.b16 %v51
  %v133 = vunpack.c.l.b16 %v52
  %v134 = vunpack.c.l.b16 %v53
  %v135 = vunpack.c.l.b16 %v54
  %v136 = vunpack.c.l.b16 %v55
  %v137 = vunpack.c.l.b16 %v56
  %v138 = vunpack.c.l.b16 %v57
  %v139 = vpack.c.b16 %v108, %v107
  %v140 = vpack.c.b16 %v110, %v109
  %v141 = vpack.c.b16 %v112, %v111
  %v142 = vpack.c.b16 %v114, %v113
  %v143 = vpack.c.b16 %v116, %v115
  %v144 = vpack.c.b16 %v118, %v117
  %v145 = vpack.c.b16 %v120, %v119
  %v146 = vpack.c.b16 %v122, %v121
  %v147 = vpack.c.b16 %v124, %v123
  %v148 = vpack.c.b16 %v126, %v125
  %v149 = vpack.c.b16 %v128, %v127
  %v150 = vpack.c.b16 %v130, %v129
  %v151 = vpack.c.b16 %v132, %v131
  %v152 = vpack.c.b16 %v134, %v133
  %v153 = vpack.c.b16 %v136, %v135
  %v154 = vpack.c.b16 %v138, %v137
  %171 = vmatpush.bf16.msra.mxu0 %v146
  %172 = vmatpush.bf16.msra.mxu0 %v145
  %173 = vmatpush.bf16.msra.mxu0 %v144
  %174 = vmatpush.bf16.msra.mxu0 %v143
  %175 = vmatpush.bf16.msra.mxu0 %v142
  %176 = vmatpush.bf16.msra.mxu0 %v141
  %177 = vmatpush.bf16.msra.mxu0 %v140
  %178 = vmatpush.bf16.msra.mxu0 %v139
  %179 = vmatmul.bf16.gmra.mxu0 %v67
  %v180 = vpop.f32.mrf.mxu0
  %v181 = vadd.f32 0.0, %v180
  %v182 = vpop.f32.mrf.mxu0
  %v183 = vadd.f32 0.0, %v182
  %184 = vmatmul.bf16.gmra.mxu0 %v69
  %v185 = vpop.f32.mrf.mxu0
  %v186 = vadd.f32 0.0, %v185
  %v187 = vpop.f32.mrf.mxu0
  %188 = vdwg.mxu0
  %189 = vmatpush.bf16.msra.mxu0 %v154
  %190 = vmatpush.bf16.msra.mxu0 %v153
  %191 = vmatpush.bf16.msra.mxu0 %v152
  %192 = vmatpush.bf16.msra.mxu0 %v151
  %193 = vmatpush.bf16.msra.mxu0 %v150
  %194 = vmatpush.bf16.msra.mxu0 %v149
  %195 = vmatpush.bf16.msra.mxu0 %v148
  %196 = vmatpush.bf16.msra.mxu0 %v147
  %197 = vmatmul.bf16.gmra.mxu0 %v68
  %v198 = vpop.f32.mrf.mxu0
  %v199 = vadd.f32 %v181, %v198
  %v200 = vpop.f32.mrf.mxu0
  %v201 = vadd.f32 %v183, %v200
  %202 = vmatmul.bf16.gmra.mxu0 %v70
  %v203 = vpop.f32.mrf.mxu0
  %v204 = vadd.f32 %v186, %v203
  %v205 = vpop.f32.mrf.mxu0
  %206 = vdwg.mxu0
  %v207 = vadd.f32 %v20, %v199
  %v208 = vadd.f32 %v21, %v201
  %v209 = vadd.f32 %v22, %v204
  %210 = vst [vmem:[#allocation2] sm:$0xff] %v207
  %211 = vst [vmem:[#allocation2 + $0x8] sm:$0xff] %v208
  %212 = vst [vmem:[#allocation2 + $0x10] sm:$0xff] %v209
  // Predicated region
  $region14: #{_lambda_.7} parent=0 // pred_check
    %p213 = pneg %p13
  $region15: #{_lambda_.7} parent=0 // pred_check_branch
    %215 = sbr.rel (%p213) target = $region17
  $region16: #{_lambda_.7} parent=0 // pred_region
    %v216 = vld [vmem:[#allocation2] sm:$0xff]
    %v217 = vld [vmem:[#allocation2 + $0x8] sm:$0xff]
    %v218 = vld [vmem:[#allocation2 + $0x10] sm:$0xff]
    %v219 = vpack.c.bf16 %v216, %v216
    %v220 = vpack.c.bf16 %v217, %v217
    %v221 = vpack.c.bf16 %v218, %v218
    %222 = vst [vmem:[%s2] sm:$0xf] %v219
    %223 = vst [vmem:[%s2 + $0x4] sm:$0xf] %v220
    %224 = vst [vmem:[%s2 + $0x8] sm:$0xf] %v221
    %v225 = vadd.f32 %v216, %v217
    %v226 = vadd.f32 %v225, %v218
    %v227 = vrot.slane %v226, 4
    %v228 = vadd.f32 %v226, %v227
    %v229 = vrot.slane %v228, 2
    %v230 = vadd.f32 %v228, %v229
    %v231 = vrot.slane %v230, 1
    %v232 = vadd.f32 %v230, %v231
    %233 = vst [vmem:[%s3] sm:$0x1] %v232
    %v234 = vmul.f32 %v216, %v216
    %v235 = vmul.f32 %v217, %v217
    %v236 = vmul.f32 %v218, %v218
    %v237 = vadd.f32 %v234, %v235
    %v238 = vadd.f32 %v237, %v236
    %v239 = vrot.slane %v238, 4
    %v240 = vadd.f32 %v238, %v239
    %v241 = vrot.slane %v240, 2
    %v242 = vadd.f32 %v240, %v241
    %v243 = vrot.slane %v242, 1
    %v244 = vadd.f32 %v242, %v243
    %245 = vst [vmem:[%s3 + $0x1] sm:$0x1] %v244
  $region17: #{_lambda_.7} parent=0 // pred_fallthru
    _
  // Predicated region
  $region18: #{_lambda_.7} parent=0 // pred_check
    _
  $region19: #{_lambda_.7} parent=0 // pred_check_branch
    %247 = sbr.rel (0) target = $region21
  $region20: #{_lambda_.7} parent=0 // pred_region
    _
  $region21: #{_lambda_.7} parent=0 // pred_fallthru
    _
  // Predicated region
  $region22: #{_lambda_.7} parent=0 // pred_check
    _
  $region23: #{_lambda_.7} parent=0 // pred_check_branch
    %249 = sbr.rel (0) target = $region25
  $region24: #{_lambda_.7} parent=0 // pred_region
    _
  $region25: #{_lambda_.7} parent=0 // pred_fallthru
    _
  // Predicated region
  $region26: #{_lambda_.7} parent=0 // pred_check
    _
  $region27: #{_lambda_.7} parent=0 // pred_check_branch
    %251 = sbr.rel (0) target = $region29
  $region28: #{_lambda_.7} parent=0 // pred_region
    _
  $region29: #{_lambda_.7} parent=0 // pred_fallthru
    _
  // Predicated region
  $region30: #{_lambda_.7} parent=0 // pred_check
    _
  $region31: #{_lambda_.7} parent=0 // pred_check_branch
    %253 = sbr.rel (0) target = $region33
  $region32: #{_lambda_.7} parent=0 // pred_region
    _
  $region33: #{_lambda_.7} parent=0 // pred_fallthru
    _

// kernel: _lambda_.8
$region0: #{_lambda_.8}
  #allocation0 [shape = 'u32[]', space=smem, size = 0x4, offset = 0x4, fixed_abs, tag = 'smem constant byte address 0x4 - core index']
  #allocation1 [shape = 'u32[72,128]{1,0:T(1,128)}', space=vmem, size = 0x9000, scoped, tag = 'internal scratch']
  #allocation2 [shape = 'f32[32,128]{1,0:T(8,128)}', space=vmem, size = 0x4000, scoped, tag = 'scratch operand']
  %s0 = inlined_call_operand.vmem [shape: bf16[32,512], index: 0, kind: input, shape index: {}]
  %s1 = inlined_call_operand.vmem [shape: bf16[512,128], index: 1, kind: input, shape index: {}]
  %s2 = inlined_call_operand.vmem [shape: bf16[32,128], index: 2, kind: output, shape index: {0}]
  %s3 = inlined_call_operand.vmem [shape: f32[1,2,128], index: 3, kind: output, shape index: {1}]
  %4 = xla_tuple %s2, %s3
  %s5 = sld [smem:[#allocation0]]
  $region34: #{_lambda_.8} parent=0
    _
  %s7 = ssub.s32 1, %s5
  %s8 = scalar_select 0, %s7, %s5
  // Predicated region
  $region2: #{_lambda_.8} parent=0 // pred_check
    _
  $region3: #{_lambda_.8} parent=0 // pred_check_branch
    %10 = sbr.rel (0) target = $region5
  $region4: #{_lambda_.8} parent=0 // pred_region
    _
  $region5: #{_lambda_.8} parent=0 // pred_fallthru
    _
  // Predicated region
  $region6: #{_lambda_.8} parent=0 // pred_check
    _
  $region7: #{_lambda_.8} parent=0 // pred_check_branch
    %12 = sbr.rel (0) target = $region9
  $region8: #{_lambda_.8} parent=0 // pred_region
    _
  $region9: #{_lambda_.8} parent=0 // pred_fallthru
    _
  %p13 = scmp.eq.s32.totalorder 0, 0
  // Predicated region
  $region10: #{_lambda_.8} parent=0 // pred_check
    %p14 = pneg %p13
  $region11: #{_lambda_.8} parent=0 // pred_check_branch
    %16 = sbr.rel (%p14) target = $region13
  $region12: #{_lambda_.8} parent=0 // pred_region
    %17 = vst [vmem:[#allocation2] sm:$0xff] 0.0
    %18 = vst [vmem:[#allocation2 + $0x8] sm:$0xff] 0.0
    %19 = vst [vmem:[#allocation2 + $0x10] sm:$0xff] 0.0
    %20 = vst [vmem:[#allocation2 + $0x18] sm:$0xff] 0.0
  $region13: #{_lambda_.8} parent=0 // pred_fallthru
    _
  %v21 = vld [vmem:[#allocation2] sm:$0xff]
  %v22 = vld [vmem:[#allocation2 + $0x8] sm:$0xff]
  %v23 = vld [vmem:[#allocation2 + $0x10] sm:$0xff]
  %v24 = vld [vmem:[#allocation2 + $0x18] sm:$0xff]
  %v25 = vld [vmem:[%s0] sm:$0xff]
  %v26 = vld [vmem:[%s0 + $0x8] sm:$0xff]
  %v27 = vld [vmem:[%s0 + $0x10] sm:$0xff]
  %v28 = vld [vmem:[%s0 + $0x18] sm:$0xff]
  %v29 = vld [vmem:[%s0 + $0x20] sm:$0xff]
  %v30 = vld [vmem:[%s0 + $0x28] sm:$0xff]
  %v31 = vld [vmem:[%s0 + $0x30] sm:$0xff]
  %v32 = vld [vmem:[%s0 + $0x38] sm:$0xff]
  %v33 = vld [vmem:[%s1] sm:$0xf]
  %v34 = vld [vmem:[%s1 + $0x4] sm:$0xf]
  %v35 = vld [vmem:[%s1 + $0x8] sm:$0xf]
  %v36 = vld [vmem:[%s1 + $0xc] sm:$0xf]
  %v37 = vld [vmem:[%s1 + $0x10] sm:$0xf]
  %v38 = vld [vmem:[%s1 + $0x14] sm:$0xf]
  %v39 = vld [vmem:[%s1 + $0x18] sm:$0xf]
  %v40 = vld [vmem:[%s1 + $0x1c] sm:$0xf]
  %v41 = vld [vmem:[%s1 + $0x20] sm:$0xf]
  %v42 = vld [vmem:[%s1 + $0x24] sm:$0xf]
  %v43 = vld [vmem:[%s1 + $0x28] sm:$0xf]
  %v44 = vld [vmem:[%s1 + $0x2c] sm:$0xf]
  %v45 = vld [vmem:[%s1 + $0x30] sm:$0xf]
  %v46 = vld [vmem:[%s1 + $0x34] sm:$0xf]
  %v47 = vld [vmem:[%s1 + $0x38] sm:$0xf]
  %v48 = vld [vmem:[%s1 + $0x3c] sm:$0xf]
  %v49 = vld [vmem:[%s1 + $0x40] sm:$0xf]
  %v50 = vld [vmem:[%s1 + $0x44] sm:$0xf]
  %v51 = vld [vmem:[%s1 + $0x48] sm:$0xf]
  %v52 = vld [vmem:[%s1 + $0x4c] sm:$0xf]
  %v53 = vld [vmem:[%s1 + $0x50] sm:$0xf]
  %v54 = vld [vmem:[%s1 + $0x54] sm:$0xf]
  %v55 = vld [vmem:[%s1 + $0x58] sm:$0xf]
  %v56 = vld [vmem:[%s1 + $0x5c] sm:$0xf]
  %v57 = vld [vmem:[%s1 + $0x60] sm:$0xf]
  %v58 = vld [vmem:[%s1 + $0x64] sm:$0xf]
  %v59 = vld [vmem:[%s1 + $0x68] sm:$0xf]
  %v60 = vld [vmem:[%s1 + $0x6c] sm:$0xf]
  %v61 = vld [vmem:[%s1 + $0x70] sm:$0xf]
  %v62 = vld [vmem:[%s1 + $0x74] sm:$0xf]
  %v63 = vld [vmem:[%s1 + $0x78] sm:$0xf]
  %v64 = vld [vmem:[%s1 + $0x7c] sm:$0xf]
  %v65 = vld [vmem:[%s1 + $0x80] sm:$0xf]
  %v66 = vld [vmem:[%s1 + $0x84] sm:$0xf]
  %v67 = vld [vmem:[%s1 + $0x88] sm:$0xf]
  %v68 = vld [vmem:[%s1 + $0x8c] sm:$0xf]
  %v69 = vld [vmem:[%s1 + $0x90] sm:$0xf]
  %v70 = vld [vmem:[%s1 + $0x94] sm:$0xf]
  %v71 = vld [vmem:[%s1 + $0x98] sm:$0xf]
  %v72 = vld [vmem:[%s1 + $0x9c] sm:$0xf]
  %v73 = vld [vmem:[%s1 + $0xa0] sm:$0xf]
  %v74 = vld [vmem:[%s1 + $0xa4] sm:$0xf]
  %v75 = vld [vmem:[%s1 + $0xa8] sm:$0xf]
  %v76 = vld [vmem:[%s1 + $0xac] sm:$0xf]
  %v77 = vld [vmem:[%s1 + $0xb0] sm:$0xf]
  %v78 = vld [vmem:[%s1 + $0xb4] sm:$0xf]
  %v79 = vld [vmem:[%s1 + $0xb8] sm:$0xf]
  %v80 = vld [vmem:[%s1 + $0xbc] sm:$0xf]
  %v81 = vld [vmem:[%s1 + $0xc0] sm:$0xf]
  %v82 = vld [vmem:[%s1 + $0xc4] sm:$0xf]
  %v83 = vld [vmem:[%s1 + $0xc8] sm:$0xf]
  %v84 = vld [vmem:[%s1 + $0xcc] sm:$0xf]
  %v85 = vld [vmem:[%s1 + $0xd0] sm:$0xf]
  %v86 = vld [vmem:[%s1 + $0xd4] sm:$0xf]
  %v87 = vld [vmem:[%s1 + $0xd8] sm:$0xf]
  %v88 = vld [vmem:[%s1 + $0xdc] sm:$0xf]
  %v89 = vld [vmem:[%s1 + $0xe0] sm:$0xf]
  %v90 = vld [vmem:[%s1 + $0xe4] sm:$0xf]
  %v91 = vld [vmem:[%s1 + $0xe8] sm:$0xf]
  %v92 = vld [vmem:[%s1 + $0xec] sm:$0xf]
  %v93 = vld [vmem:[%s1 + $0xf0] sm:$0xf]
  %v94 = vld [vmem:[%s1 + $0xf4] sm:$0xf]
  %v95 = vld [vmem:[%s1 + $0xf8] sm:$0xf]
  %v96 = vld [vmem:[%s1 + $0xfc] sm:$0xf]
  %v105 = vunpack.c.l.b16 %v25
  %v106 = vunpack.c.h.b16 %v25
  %v107 = vunpack.c.l.b16 %v26
  %v108 = vunpack.c.h.b16 %v26
  %v109 = vunpack.c.l.b16 %v27
  %v110 = vunpack.c.h.b16 %v27
  %v111 = vunpack.c.l.b16 %v28
  %v112 = vunpack.c.h.b16 %v28
  %v113 = vunpack.c.l.b16 %v29
  %v114 = vunpack.c.h.b16 %v29
  %v115 = vunpack.c.l.b16 %v30
  %v116 = vunpack.c.h.b16 %v30
  %v117 = vunpack.c.l.b16 %v31
  %v118 = vunpack.c.h.b16 %v31
  %v119 = vunpack.c.l.b16 %v32
  %v120 = vunpack.c.h.b16 %v32
  %v121 = vpack.c.b16 %v109, %v105
  %v122 = vpack.c.b16 %v110, %v106
  %v123 = vpack.c.b16 %v111, %v107
  %v124 = vpack.c.b16 %v112, %v108
  %v125 = vpack.c.b16 %v117, %v113
  %v126 = vpack.c.b16 %v118, %v114
  %v127 = vpack.c.b16 %v119, %v115
  %v128 = vpack.c.b16 %v120, %v116
  %v201 = vunpack.c.l.b16 %v33
  %v202 = vunpack.c.l.b16 %v34
  %v203 = vunpack.c.l.b16 %v35
  %v204 = vunpack.c.l.b16 %v36
  %v205 = vunpack.c.l.b16 %v37
  %v206 = vunpack.c.l.b16 %v38
  %v207 = vunpack.c.l.b16 %v39
  %v208 = vunpack.c.l.b16 %v40
  %v209 = vunpack.c.l.b16 %v41
  %v210 = vunpack.c.l.b16 %v42
  %v211 = vunpack.c.l.b16 %v43
  %v212 = vunpack.c.l.b16 %v44
  %v213 = vunpack.c.l.b16 %v45
  %v214 = vunpack.c.l.b16 %v46
  %v215 = vunpack.c.l.b16 %v47
  %v216 = vunpack.c.l.b16 %v48
  %v217 = vunpack.c.l.b16 %v49
  %v218 = vunpack.c.l.b16 %v50
  %v219 = vunpack.c.l.b16 %v51
  %v220 = vunpack.c.l.b16 %v52
  %v221 = vunpack.c.l.b16 %v53
  %v222 = vunpack.c.l.b16 %v54
  %v223 = vunpack.c.l.b16 %v55
  %v224 = vunpack.c.l.b16 %v56
  %v225 = vunpack.c.l.b16 %v57
  %v226 = vunpack.c.l.b16 %v58
  %v227 = vunpack.c.l.b16 %v59
  %v228 = vunpack.c.l.b16 %v60
  %v229 = vunpack.c.l.b16 %v61
  %v230 = vunpack.c.l.b16 %v62
  %v231 = vunpack.c.l.b16 %v63
  %v232 = vunpack.c.l.b16 %v64
  %v233 = vunpack.c.l.b16 %v65
  %v234 = vunpack.c.l.b16 %v66
  %v235 = vunpack.c.l.b16 %v67
  %v236 = vunpack.c.l.b16 %v68
  %v237 = vunpack.c.l.b16 %v69
  %v238 = vunpack.c.l.b16 %v70
  %v239 = vunpack.c.l.b16 %v71
  %v240 = vunpack.c.l.b16 %v72
  %v241 = vunpack.c.l.b16 %v73
  %v242 = vunpack.c.l.b16 %v74
  %v243 = vunpack.c.l.b16 %v75
  %v244 = vunpack.c.l.b16 %v76
  %v245 = vunpack.c.l.b16 %v77
  %v246 = vunpack.c.l.b16 %v78
  %v247 = vunpack.c.l.b16 %v79
  %v248 = vunpack.c.l.b16 %v80
  %v249 = vunpack.c.l.b16 %v81
  %v250 = vunpack.c.l.b16 %v82
  %v251 = vunpack.c.l.b16 %v83
  %v252 = vunpack.c.l.b16 %v84
  %v253 = vunpack.c.l.b16 %v85
  %v254 = vunpack.c.l.b16 %v86
  %v255 = vunpack.c.l.b16 %v87
  %v256 = vunpack.c.l.b16 %v88
  %v257 = vunpack.c.l.b16 %v89
  %v258 = vunpack.c.l.b16 %v90
  %v259 = vunpack.c.l.b16 %v91
  %v260 = vunpack.c.l.b16 %v92
  %v261 = vunpack.c.l.b16 %v93
  %v262 = vunpack.c.l.b16 %v94
  %v263 = vunpack.c.l.b16 %v95
  %v264 = vunpack.c.l.b16 %v96
  %v265 = vpack.c.b16 %v202, %v201
  %v266 = vpack.c.b16 %v204, %v203
  %v267 = vpack.c.b16 %v206, %v205
  %v268 = vpack.c.b16 %v208, %v207
  %v269 = vpack.c.b16 %v210, %v209
  %v270 = vpack.c.b16 %v212, %v211
  %v271 = vpack.c.b16 %v214, %v213
  %v272 = vpack.c.b16 %v216, %v215
  %v273 = vpack.c.b16 %v218, %v217
  %v274 = vpack.c.b16 %v220, %v219
  %v275 = vpack.c.b16 %v222, %v221
  %v276 = vpack.c.b16 %v224, %v223
  %v277 = vpack.c.b16 %v226, %v225
  %v278 = vpack.c.b16 %v228, %v227
  %v279 = vpack.c.b16 %v230, %v229
  %v280 = vpack.c.b16 %v232, %v231
  %v281 = vpack.c.b16 %v234, %v233
  %v282 = vpack.c.b16 %v236, %v235
  %v283 = vpack.c.b16 %v238, %v237
  %v284 = vpack.c.b16 %v240, %v239
  %v285 = vpack.c.b16 %v242, %v241
  %v286 = vpack.c.b16 %v244, %v243
  %v287 = vpack.c.b16 %v246, %v245
  %v288 = vpack.c.b16 %v248, %v247
  %v289 = vpack.c.b16 %v250, %v249
  %v290 = vpack.c.b16 %v252, %v251
  %v291 = vpack.c.b16 %v254, %v253
  %v292 = vpack.c.b16 %v256, %v255
  %v293 = vpack.c.b16 %v258, %v257
  %v294 = vpack.c.b16 %v260, %v259
  %v295 = vpack.c.b16 %v262, %v261
  %v296 = vpack.c.b16 %v264, %v263
  %329 = vmatpush.bf16.msra.mxu0 %v272
  %330 = vmatpush.bf16.msra.mxu0 %v271
  %331 = vmatpush.bf16.msra.mxu0 %v270
  %332 = vmatpush.bf16.msra.mxu0 %v269
  %333 = vmatpush.bf16.msra.mxu0 %v268
  %334 = vmatpush.bf16.msra.mxu0 %v267
  %335 = vmatpush.bf16.msra.mxu0 %v266
  %336 = vmatpush.bf16.msra.mxu0 %v265
  %337 = vmatmul.bf16.gmra.mxu0 %v121
  %v338 = vpop.f32.mrf.mxu0
  %v339 = vadd.f32 0.0, %v338
  %v340 = vpop.f32.mrf.mxu0
  %v341 = vadd.f32 0.0, %v340
  %342 = vmatmul.bf16.gmra.mxu0 %v125
  %v343 = vpop.f32.mrf.mxu0
  %v344 = vadd.f32 0.0, %v343
  %v345 = vpop.f32.mrf.mxu0
  %v346 = vadd.f32 0.0, %v345
  %347 = vdwg.mxu0
  %348 = vmatpush.bf16.msra.mxu0 %v280
  %349 = vmatpush.bf16.msra.mxu0 %v279
  %350 = vmatpush.bf16.msra.mxu0 %v278
  %351 = vmatpush.bf16.msra.mxu0 %v277
  %352 = vmatpush.bf16.msra.mxu0 %v276
  %353 = vmatpush.bf16.msra.mxu0 %v275
  %354 = vmatpush.bf16.msra.mxu0 %v274
  %355 = vmatpush.bf16.msra.mxu0 %v273
  %356 = vmatmul.bf16.gmra.mxu0 %v122
  %v357 = vpop.f32.mrf.mxu0
  %v358 = vadd.f32 %v339, %v357
  %v359 = vpop.f32.mrf.mxu0
  %v360 = vadd.f32 %v341, %v359
  %361 = vmatmul.bf16.gmra.mxu0 %v126
  %v362 = vpop.f32.mrf.mxu0
  %v363 = vadd.f32 %v344, %v362
  %v364 = vpop.f32.mrf.mxu0
  %v365 = vadd.f32 %v346, %v364
  %366 = vdwg.mxu0
  %367 = vmatpush.bf16.msra.mxu0 %v288
  %368 = vmatpush.bf16.msra.mxu0 %v287
  %369 = vmatpush.bf16.msra.mxu0 %v286
  %370 = vmatpush.bf16.msra.mxu0 %v285
  %371 = vmatpush.bf16.msra.mxu0 %v284
  %372 = vmatpush.bf16.msra.mxu0 %v283
  %373 = vmatpush.bf16.msra.mxu0 %v282
  %374 = vmatpush.bf16.msra.mxu0 %v281
  %375 = vmatmul.bf16.gmra.mxu0 %v123
  %v376 = vpop.f32.mrf.mxu0
  %v377 = vadd.f32 %v358, %v376
  %v378 = vpop.f32.mrf.mxu0
  %v379 = vadd.f32 %v360, %v378
  %380 = vmatmul.bf16.gmra.mxu0 %v127
  %v381 = vpop.f32.mrf.mxu0
  %v382 = vadd.f32 %v363, %v381
  %v383 = vpop.f32.mrf.mxu0
  %v384 = vadd.f32 %v365, %v383
  %385 = vdwg.mxu0
  %386 = vmatpush.bf16.msra.mxu0 %v296
  %387 = vmatpush.bf16.msra.mxu0 %v295
  %388 = vmatpush.bf16.msra.mxu0 %v294
  %389 = vmatpush.bf16.msra.mxu0 %v293
  %390 = vmatpush.bf16.msra.mxu0 %v292
  %391 = vmatpush.bf16.msra.mxu0 %v291
  %392 = vmatpush.bf16.msra.mxu0 %v290
  %393 = vmatpush.bf16.msra.mxu0 %v289
  %394 = vmatmul.bf16.gmra.mxu0 %v124
  %v395 = vpop.f32.mrf.mxu0
  %v396 = vadd.f32 %v377, %v395
  %v397 = vpop.f32.mrf.mxu0
  %v398 = vadd.f32 %v379, %v397
  %399 = vmatmul.bf16.gmra.mxu0 %v128
  %v400 = vpop.f32.mrf.mxu0
  %v401 = vadd.f32 %v382, %v400
  %v402 = vpop.f32.mrf.mxu0
  %v403 = vadd.f32 %v384, %v402
  %404 = vdwg.mxu0
  %v405 = vadd.f32 %v21, %v396
  %v406 = vadd.f32 %v22, %v398
  %v407 = vadd.f32 %v23, %v401
  %v408 = vadd.f32 %v24, %v403
  %409 = vst [vmem:[#allocation2] sm:$0xff] %v405
  %410 = vst [vmem:[#allocation2 + $0x8] sm:$0xff] %v406
  %411 = vst [vmem:[#allocation2 + $0x10] sm:$0xff] %v407
  %412 = vst [vmem:[#allocation2 + $0x18] sm:$0xff] %v408
  // Predicated region
  $region14: #{_lambda_.8} parent=0 // pred_check
    %p413 = pneg %p13
  $region15: #{_lambda_.8} parent=0 // pred_check_branch
    %415 = sbr.rel (%p413) target = $region17
  $region16: #{_lambda_.8} parent=0 // pred_region
    %v416 = vld [vmem:[#allocation2] sm:$0xff]
    %v417 = vld [vmem:[#allocation2 + $0x8] sm:$0xff]
    %v418 = vld [vmem:[#allocation2 + $0x10] sm:$0xff]
    %v419 = vld [vmem:[#allocation2 + $0x18] sm:$0xff]
    %v420 = vpack.c.bf16 %v416, %v416
    %v421 = vpack.c.bf16 %v417, %v417
    %v422 = vpack.c.bf16 %v418, %v418
    %v423 = vpack.c.bf16 %v419, %v419
    %424 = vst [vmem:[%s2] sm:$0xf] %v420
    %425 = vst [vmem:[%s2 + $0x4] sm:$0xf] %v421
    %426 = vst [vmem:[%s2 + $0x8] sm:$0xf] %v422
    %427 = vst [vmem:[%s2 + $0xc] sm:$0xf] %v423
    %v428 = vadd.f32 %v416, %v417
    %v429 = vadd.f32 %v428, %v418
    %v430 = vadd.f32 %v429, %v419
    %v431 = vrot.slane %v430, 4
    %v432 = vadd.f32 %v430, %v431
    %v433 = vrot.slane %v432, 2
    %v434 = vadd.f32 %v432, %v433
    %v435 = vrot.slane %v434, 1
    %v436 = vadd.f32 %v434, %v435
    %437 = vst [vmem:[%s3] sm:$0x1] %v436
    %v438 = vmul.f32 %v416, %v416
    %v439 = vmul.f32 %v417, %v417
    %v440 = vmul.f32 %v418, %v418
    %v441 = vmul.f32 %v419, %v419
    %v442 = vadd.f32 %v438, %v439
    %v443 = vadd.f32 %v442, %v440
    %v444 = vadd.f32 %v443, %v441
    %v445 = vrot.slane %v444, 4
    %v446 = vadd.f32 %v444, %v445
    %v447 = vrot.slane %v446, 2
    %v448 = vadd.f32 %v446, %v447
    %v449 = vrot.slane %v448, 1
    %v450 = vadd.f32 %v448, %v449
    %451 = vst [vmem:[%s3 + $0x1] sm:$0x1] %v450
  $region17: #{_lambda_.8} parent=0 // pred_fallthru
    _
  // Predicated region
  $region18: #{_lambda_.8} parent=0 // pred_check
    _
  $region19: #{_lambda_.8} parent=0 // pred_check_branch
    %453 = sbr.rel (0) target = $region21
  $region20: #{_lambda_.8} parent=0 // pred_region
    _
  $region21: #{_lambda_.8} parent=0 // pred_fallthru
    _
  // Predicated region
  $region22: #{_lambda_.8} parent=0 // pred_check
    _
  $region23: #{_lambda_.8} parent=0 // pred_check_branch
    %455 = sbr.rel (0) target = $region25
  $region24: #{_lambda_.8} parent=0 // pred_region
    _
  $region25: #{_lambda_.8} parent=0 // pred_fallthru
    _
  // Predicated region
  $region26: #{_lambda_.8} parent=0 // pred_check
    _
  $region27: #{_lambda_.8} parent=0 // pred_check_branch
    %457 = sbr.rel (0) target = $region29
  $region28: #{_lambda_.8} parent=0 // pred_region
    _
  $region29: #{_lambda_.8} parent=0 // pred_fallthru
    _
  // Predicated region
  $region30: #{_lambda_.8} parent=0 // pred_check
    _
  $region31: #{_lambda_.8} parent=0 // pred_check_branch
    %459 = sbr.rel (0) target = $region33
  $region32: #{_lambda_.8} parent=0 // pred_region
    _
  $region33: #{_lambda_.8} parent=0 // pred_fallthru
    _

// kernel: _lambda_.9
$region0: #{_lambda_.9}
  #allocation0 [shape = 'u32[]', space=smem, size = 0x4, offset = 0x4, fixed_abs, tag = 'smem constant byte address 0x4 - core index']
  #allocation1 [shape = 'u32[72,128]{1,0:T(1,128)}', space=vmem, size = 0x9000, scoped, tag = 'internal scratch']
  #allocation2 [shape = 'f32[56,128]{1,0:T(8,128)}', space=vmem, size = 0x7000, scoped, tag = 'scratch operand']
  %s0 = inlined_call_operand.vmem [shape: bf16[56,1024], index: 0, kind: input, shape index: {}]
  %s1 = inlined_call_operand.vmem [shape: bf16[1024,128], index: 1, kind: input, shape index: {}]
  %s2 = inlined_call_operand.vmem [shape: f32[1,128], index: 2, kind: input, shape index: {}]
  %s3 = inlined_call_operand.vmem [shape: f32[56,128], index: 3, kind: output, shape index: {}]
  %s4 = sld [smem:[#allocation0]]
  $region30: #{_lambda_.9} parent=0
    _
  %s6 = ssub.s32 1, %s4
  %s7 = scalar_select 0, %s6, %s4
  // Predicated region
  $region2: #{_lambda_.9} parent=0 // pred_check
    _
  $region3: #{_lambda_.9} parent=0 // pred_check_branch
    %9 = sbr.rel (0) target = $region5
  $region4: #{_lambda_.9} parent=0 // pred_region
    _
  $region5: #{_lambda_.9} parent=0 // pred_fallthru
    _
  // Predicated region
  $region6: #{_lambda_.9} parent=0 // pred_check
    _
  $region7: #{_lambda_.9} parent=0 // pred_check_branch
    %11 = sbr.rel (0) target = $region9
  $region8: #{_lambda_.9} parent=0 // pred_region
    _
  $region9: #{_lambda_.9} parent=0 // pred_fallthru
    _
  // Predicated region
  $region10: #{_lambda_.9} parent=0 // pred_check
    _
  $region11: #{_lambda_.9} parent=0 // pred_check_branch
    %13 = sbr.rel (0) target = $region13
  $region12: #{_lambda_.9} parent=0 // pred_region
    _
  $region13: #{_lambda_.9} parent=0 // pred_fallthru
    _
  %p14 = scmp.eq.s32.totalorder 0, 0
  // Predicated region
  $region14: #{_lambda_.9} parent=0 // pred_check
    %p15 = pneg %p14
  $region15: #{_lambda_.9} parent=0 // pred_check_branch
    %17 = sbr.rel (%p15) target = $region17
  $region16: #{_lambda_.9} parent=0 // pred_region
    %18 = vst [vmem:[#allocation2] sm:$0xff] 0.0
    %19 = vst [vmem:[#allocation2 + $0x8] sm:$0xff] 0.0
    %20 = vst [vmem:[#allocation2 + $0x10] sm:$0xff] 0.0
    %21 = vst [vmem:[#allocation2 + $0x18] sm:$0xff] 0.0
    %22 = vst [vmem:[#allocation2 + $0x20] sm:$0xff] 0.0
    %23 = vst [vmem:[#allocation2 + $0x28] sm:$0xff] 0.0
    %24 = vst [vmem:[#allocation2 + $0x30] sm:$0xff] 0.0
  $region17: #{_lambda_.9} parent=0 // pred_fallthru
    _
  %v25 = vld [vmem:[#allocation2] sm:$0xff]
  %v26 = vld [vmem:[#allocation2 + $0x8] sm:$0xff]
  %v27 = vld [vmem:[#allocation2 + $0x10] sm:$0xff]
  %v28 = vld [vmem:[#allocation2 + $0x18] sm:$0xff]
  %v29 = vld [vmem:[#allocation2 + $0x20] sm:$0xff]
  %v30 = vld [vmem:[#allocation2 + $0x28] sm:$0xff]
  %v31 = vld [vmem:[#allocation2 + $0x30] sm:$0xff]
  %v32 = vld [vmem:[%s0] sm:$0xff]
  %v33 = vld [vmem:[%s0 + $0x8] sm:$0xff]
  %v34 = vld [vmem:[%s0 + $0x10] sm:$0xff]
  %v35 = vld [vmem:[%s0 + $0x18] sm:$0xff]
  %v36 = vld [vmem:[%s0 + $0x20] sm:$0xff]
  %v37 = vld [vmem:[%s0 + $0x28] sm:$0xff]
  %v38 = vld [vmem:[%s0 + $0x30] sm:$0xff]
  %v39 = vld [vmem:[%s0 + $0x38] sm:$0xff]
  %v40 = vld [vmem:[%s0 + $0x40] sm:$0xff]
  %v41 = vld [vmem:[%s0 + $0x48] sm:$0xff]
  %v42 = vld [vmem:[%s0 + $0x50] sm:$0xff]
  %v43 = vld [vmem:[%s0 + $0x58] sm:$0xff]
  %v44 = vld [vmem:[%s0 + $0x60] sm:$0xff]
  %v45 = vld [vmem:[%s0 + $0x68] sm:$0xff]
  %v46 = vld [vmem:[%s0 + $0x70] sm:$0xff]
  %v47 = vld [vmem:[%s0 + $0x78] sm:$0xff]
  %v48 = vld [vmem:[%s0 + $0x80] sm:$0xff]
  %v49 = vld [vmem:[%s0 + $0x88] sm:$0xff]
  %v50 = vld [vmem:[%s0 + $0x90] sm:$0xff]
  %v51 = vld [vmem:[%s0 + $0x98] sm:$0xff]
  %v52 = vld [vmem:[%s0 + $0xa0] sm:$0xff]
  %v53 = vld [vmem:[%s0 + $0xa8] sm:$0xff]
  %v54 = vld [vmem:[%s0 + $0xb0] sm:$0xff]
  %v55 = vld [vmem:[%s0 + $0xb8] sm:$0xff]
  %v56 = vld [vmem:[%s0 + $0xc0] sm:$0xff]
  %v57 = vld [vmem:[%s0 + $0xc8] sm:$0xff]
  %v58 = vld [vmem:[%s0 + $0xd0] sm:$0xff]
  %v59 = vld [vmem:[%s0 + $0xd8] sm:$0xff]
  %v60 = vld [vmem:[%s1] sm:$0xf]
  %v61 = vld [vmem:[%s1 + $0x4] sm:$0xf]
  %v62 = vld [vmem:[%s1 + $0x8] sm:$0xf]
  %v63 = vld [vmem:[%s1 + $0xc] sm:$0xf]
  %v64 = vld [vmem:[%s1 + $0x10] sm:$0xf]
  %v65 = vld [vmem:[%s1 + $0x14] sm:$0xf]
  %v66 = vld [vmem:[%s1 + $0x18] sm:$0xf]
  %v67 = vld [vmem:[%s1 + $0x1c] sm:$0xf]
  %v68 = vld [vmem:[%s1 + $0x20] sm:$0xf]
  %v69 = vld [vmem:[%s1 + $0x24] sm:$0xf]
  %v70 = vld [vmem:[%s1 + $0x28] sm:$0xf]
  %v71 = vld [vmem:[%s1 + $0x2c] sm:$0xf]
  %v72 = vld [vmem:[%s1 + $0x30] sm:$0xf]
  %v73 = vld [vmem:[%s1 + $0x34] sm:$0xf]
  %v74 = vld [vmem:[%s1 + $0x38] sm:$0xf]
  %v75 = vld [vmem:[%s1 + $0x3c] sm:$0xf]
  %v76 = vld [vmem:[%s1 + $0x40] sm:$0xf]
  %v77 = vld [vmem:[%s1 + $0x44] sm:$0xf]
  %v78 = vld [vmem:[%s1 + $0x48] sm:$0xf]
  %v79 = vld [vmem:[%s1 + $0x4c] sm:$0xf]
  %v80 = vld [vmem:[%s1 + $0x50] sm:$0xf]
  %v81 = vld [vmem:[%s1 + $0x54] sm:$0xf]
  %v82 = vld [vmem:[%s1 + $0x58] sm:$0xf]
  %v83 = vld [vmem:[%s1 + $0x5c] sm:$0xf]
  %v84 = vld [vmem:[%s1 + $0x60] sm:$0xf]
  %v85 = vld [vmem:[%s1 + $0x64] sm:$0xf]
  %v86 = vld [vmem:[%s1 + $0x68] sm:$0xf]
  %v87 = vld [vmem:[%s1 + $0x6c] sm:$0xf]
  %v88 = vld [vmem:[%s1 + $0x70] sm:$0xf]
  %v89 = vld [vmem:[%s1 + $0x74] sm:$0xf]
  %v90 = vld [vmem:[%s1 + $0x78] sm:$0xf]
  %v91 = vld [vmem:[%s1 + $0x7c] sm:$0xf]
  %v92 = vld [vmem:[%s1 + $0x80] sm:$0xf]
  %v93 = vld [vmem:[%s1 + $0x84] sm:$0xf]
  %v94 = vld [vmem:[%s1 + $0x88] sm:$0xf]
  %v95 = vld [vmem:[%s1 + $0x8c] sm:$0xf]
  %v96 = vld [vmem:[%s1 + $0x90] sm:$0xf]
  %v97 = vld [vmem:[%s1 + $0x94] sm:$0xf]
  %v98 = vld [vmem:[%s1 + $0x98] sm:$0xf]
  %v99 = vld [vmem:[%s1 + $0x9c] sm:$0xf]
  %v100 = vld [vmem:[%s1 + $0xa0] sm:$0xf]
  %v101 = vld [vmem:[%s1 + $0xa4] sm:$0xf]
  %v102 = vld [vmem:[%s1 + $0xa8] sm:$0xf]
  %v103 = vld [vmem:[%s1 + $0xac] sm:$0xf]
  %v104 = vld [vmem:[%s1 + $0xb0] sm:$0xf]
  %v105 = vld [vmem:[%s1 + $0xb4] sm:$0xf]
  %v106 = vld [vmem:[%s1 + $0xb8] sm:$0xf]
  %v107 = vld [vmem:[%s1 + $0xbc] sm:$0xf]
  %v108 = vld [vmem:[%s1 + $0xc0] sm:$0xf]
  %v109 = vld [vmem:[%s1 + $0xc4] sm:$0xf]
  %v110 = vld [vmem:[%s1 + $0xc8] sm:$0xf]
  %v111 = vld [vmem:[%s1 + $0xcc] sm:$0xf]
  %v112 = vld [vmem:[%s1 + $0xd0] sm:$0xf]
  %v113 = vld [vmem:[%s1 + $0xd4] sm:$0xf]
  %v114 = vld [vmem:[%s1 + $0xd8] sm:$0xf]
  %v115 = vld [vmem:[%s1 + $0xdc] sm:$0xf]
  %v116 = vld [vmem:[%s1 + $0xe0] sm:$0xf]
  %v117 = vld [vmem:[%s1 + $0xe4] sm:$0xf]
  %v118 = vld [vmem:[%s1 + $0xe8] sm:$0xf]
  %v119 = vld [vmem:[%s1 + $0xec] sm:$0xf]
  %v120 = vld [vmem:[%s1 + $0xf0] sm:$0xf]
  %v121 = vld [vmem:[%s1 + $0xf4] sm:$0xf]
  %v122 = vld [vmem:[%s1 + $0xf8] sm:$0xf]
  %v123 = vld [vmem:[%s1 + $0xfc] sm:$0xf]
  %v124 = vld [vmem:[%s1 + $0x100] sm:$0xf]
  %v125 = vld [vmem:[%s1 + $0x104] sm:$0xf]
  %v126 = vld [vmem:[%s1 + $0x108] sm:$0xf]
  %v127 = vld [vmem:[%s1 + $0x10c] sm:$0xf]
  %v128 = vld [vmem:[%s1 + $0x110] sm:$0xf]
  %v129 = vld [vmem:[%s1 + $0x114] sm:$0xf]
  %v130 = vld [vmem:[%s1 + $0x118] sm:$0xf]
  %v131 = vld [vmem:[%s1 + $0x11c] sm:$0xf]
  %v132 = vld [vmem:[%s1 + $0x120] sm:$0xf]
  %v133 = vld [vmem:[%s1 + $0x124] sm:$0xf]
  %v134 = vld [vmem:[%s1 + $0x128] sm:$0xf]
  %v135 = vld [vmem:[%s1 + $0x12c] sm:$0xf]
  %v136 = vld [vmem:[%s1 + $0x130] sm:$0xf]
  %v137 = vld [vmem:[%s1 + $0x134] sm:$0xf]
  %v138 = vld [vmem:[%s1 + $0x138] sm:$0xf]
  %v139 = vld [vmem:[%s1 + $0x13c] sm:$0xf]
  %v140 = vld [vmem:[%s1 + $0x140] sm:$0xf]
  %v141 = vld [vmem:[%s1 + $0x144] sm:$0xf]
  %v142 = vld [vmem:[%s1 + $0x148] sm:$0xf]
  %v143 = vld [vmem:[%s1 + $0x14c] sm:$0xf]
  %v144 = vld [vmem:[%s1 + $0x150] sm:$0xf]
  %v145 = vld [vmem:[%s1 + $0x154] sm:$0xf]
  %v146 = vld [vmem:[%s1 + $0x158] sm:$0xf]
  %v147 = vld [vmem:[%s1 + $0x15c] sm:$0xf]
  %v148 = vld [vmem:[%s1 + $0x160] sm:$0xf]
  %v149 = vld [vmem:[%s1 + $0x164] sm:$0xf]
  %v150 = vld [vmem:[%s1 + $0x168] sm:$0xf]
  %v151 = vld [vmem:[%s1 + $0x16c] sm:$0xf]
  %v152 = vld [vmem:[%s1 + $0x170] sm:$0xf]
  %v153 = vld [vmem:[%s1 + $0x174] sm:$0xf]
  %v154 = vld [vmem:[%s1 + $0x178] sm:$0xf]
  %v155 = vld [vmem:[%s1 + $0x17c] sm:$0xf]
  %v156 = vld [vmem:[%s1 + $0x180] sm:$0xf]
  %v157 = vld [vmem:[%s1 + $0x184] sm:$0xf]
  %v158 = vld [vmem:[%s1 + $0x188] sm:$0xf]
  %v159 = vld [vmem:[%s1 + $0x18c] sm:$0xf]
  %v160 = vld [vmem:[%s1 + $0x190] sm:$0xf]
  %v161 = vld [vmem:[%s1 + $0x194] sm:$0xf]
  %v162 = vld [vmem:[%s1 + $0x198] sm:$0xf]
  %v163 = vld [vmem:[%s1 + $0x19c] sm:$0xf]
  %v164 = vld [vmem:[%s1 + $0x1a0] sm:$0xf]
  %v165 = vld [vmem:[%s1 + $0x1a4] sm:$0xf]
  %v166 = vld [vmem:[%s1 + $0x1a8] sm:$0xf]
  %v167 = vld [vmem:[%s1 + $0x1ac] sm:$0xf]
  %v168 = vld [vmem:[%s1 + $0x1b0] sm:$0xf]
  %v169 = vld [vmem:[%s1 + $0x1b4] sm:$0xf]
  %v170 = vld [vmem:[%s1 + $0x1b8] sm:$0xf]
  %v171 = vld [vmem:[%s1 + $0x1bc] sm:$0xf]
  %v172 = vld [vmem:[%s1 + $0x1c0] sm:$0xf]
  %v173 = vld [vmem:[%s1 + $0x1c4] sm:$0xf]
  %v174 = vld [vmem:[%s1 + $0x1c8] sm:$0xf]
  %v175 = vld [vmem:[%s1 + $0x1cc] sm:$0xf]
  %v176 = vld [vmem:[%s1 + $0x1d0] sm:$0xf]
  %v177 = vld [vmem:[%s1 + $0x1d4] sm:$0xf]
  %v178 = vld [vmem:[%s1 + $0x1d8] sm:$0xf]
  %v179 = vld [vmem:[%s1 + $0x1dc] sm:$0xf]
  %v180 = vld [vmem:[%s1 + $0x1e0] sm:$0xf]
  %v181 = vld [vmem:[%s1 + $0x1e4] sm:$0xf]
  %v182 = vld [vmem:[%s1 + $0x1e8] sm:$0xf]
  %v183 = vld [vmem:[%s1 + $0x1ec] sm:$0xf]
  %v184 = vld [vmem:[%s1 + $0x1f0] sm:$0xf]
  %v185 = vld [vmem:[%s1 + $0x1f4] sm:$0xf]
  %v186 = vld [vmem:[%s1 + $0x1f8] sm:$0xf]
  %v187 = vld [vmem:[%s1 + $0x1fc] sm:$0xf]
  %v216 = vunpack.c.l.b16 %v32
  %v217 = vunpack.c.h.b16 %v32
  %v218 = vunpack.c.l.b16 %v33
  %v219 = vunpack.c.h.b16 %v33
  %v220 = vunpack.c.l.b16 %v34
  %v221 = vunpack.c.h.b16 %v34
  %v222 = vunpack.c.l.b16 %v35
  %v223 = vunpack.c.h.b16 %v35
  %v224 = vunpack.c.l.b16 %v36
  %v225 = vunpack.c.h.b16 %v36
  %v226 = vunpack.c.l.b16 %v37
  %v227 = vunpack.c.h.b16 %v37
  %v228 = vunpack.c.l.b16 %v38
  %v229 = vunpack.c.h.b16 %v38
  %v230 = vunpack.c.l.b16 %v39
  %v231 = vunpack.c.h.b16 %v39
  %v232 = vunpack.c.l.b16 %v40
  %v233 = vunpack.c.h.b16 %v40
  %v234 = vunpack.c.l.b16 %v41
  %v235 = vunpack.c.h.b16 %v41
  %v236 = vunpack.c.l.b16 %v42
  %v237 = vunpack.c.h.b16 %v42
  %v238 = vunpack.c.l.b16 %v43
  %v239 = vunpack.c.h.b16 %v43
  %v240 = vunpack.c.l.b16 %v44
  %v241 = vunpack.c.h.b16 %v44
  %v242 = vunpack.c.l.b16 %v45
  %v243 = vunpack.c.h.b16 %v45
  %v244 = vunpack.c.l.b16 %v46
  %v245 = vunpack.c.h.b16 %v46
  %v246 = vunpack.c.l.b16 %v47
  %v247 = vunpack.c.h.b16 %v47
  %v248 = vunpack.c.l.b16 %v48
  %v249 = vunpack.c.h.b16 %v48
  %v250 = vunpack.c.l.b16 %v49
  %v251 = vunpack.c.h.b16 %v49
  %v252 = vunpack.c.l.b16 %v50
  %v253 = vunpack.c.h.b16 %v50
  %v254 = vunpack.c.l.b16 %v51
  %v255 = vunpack.c.h.b16 %v51
  %v256 = vunpack.c.l.b16 %v52
  %v257 = vunpack.c.h.b16 %v52
  %v258 = vunpack.c.l.b16 %v53
  %v259 = vunpack.c.h.b16 %v53
  %v260 = vunpack.c.l.b16 %v54
  %v261 = vunpack.c.h.b16 %v54
  %v262 = vunpack.c.l.b16 %v55
  %v263 = vunpack.c.h.b16 %v55
  %v264 = vunpack.c.l.b16 %v56
  %v265 = vunpack.c.h.b16 %v56
  %v266 = vunpack.c.l.b16 %v57
  %v267 = vunpack.c.h.b16 %v57
  %v268 = vunpack.c.l.b16 %v58
  %v269 = vunpack.c.h.b16 %v58
  %v270 = vunpack.c.l.b16 %v59
  %v271 = vunpack.c.h.b16 %v59
  %v272 = vpack.c.b16 %v224, %v216
  %v273 = vpack.c.b16 %v225, %v217
  %v274 = vpack.c.b16 %v226, %v218
  %v275 = vpack.c.b16 %v227, %v219
  %v276 = vpack.c.b16 %v228, %v220
  %v277 = vpack.c.b16 %v229, %v221
  %v278 = vpack.c.b16 %v230, %v222
  %v279 = vpack.c.b16 %v231, %v223
  %v280 = vpack.c.b16 %v240, %v232
  %v281 = vpack.c.b16 %v241, %v233
  %v282 = vpack.c.b16 %v242, %v234
  %v283 = vpack.c.b16 %v243, %v235
  %v284 = vpack.c.b16 %v244, %v236
  %v285 = vpack.c.b16 %v245, %v237
  %v286 = vpack.c.b16 %v246, %v238
  %v287 = vpack.c.b16 %v247, %v239
  %v288 = vpack.c.b16 %v256, %v248
  %v289 = vpack.c.b16 %v257, %v249
  %v290 = vpack.c.b16 %v258, %v250
  %v291 = vpack.c.b16 %v259, %v251
  %v292 = vpack.c.b16 %v260, %v252
  %v293 = vpack.c.b16 %v261, %v253
  %v294 = vpack.c.b16 %v262, %v254
  %v295 = vpack.c.b16 %v263, %v255
  %v296 = vpack.c.b16 %v264, %v264
  %v297 = vpack.c.b16 %v265, %v265
  %v298 = vpack.c.b16 %v266, %v266
  %v299 = vpack.c.b16 %v267, %v267
  %v300 = vpack.c.b16 %v268, %v268
  %v301 = vpack.c.b16 %v269, %v269
  %v302 = vpack.c.b16 %v270, %v270
  %v303 = vpack.c.b16 %v271, %v271
  %v464 = vunpack.c.l.b16 %v60
  %v465 = vunpack.c.l.b16 %v61
  %v466 = vunpack.c.l.b16 %v62
  %v467 = vunpack.c.l.b16 %v63
  %v468 = vunpack.c.l.b16 %v64
  %v469 = vunpack.c.l.b16 %v65
  %v470 = vunpack.c.l.b16 %v66
  %v471 = vunpack.c.l.b16 %v67
  %v472 = vunpack.c.l.b16 %v68
  %v473 = vunpack.c.l.b16 %v69
  %v474 = vunpack.c.l.b16 %v70
  %v475 = vunpack.c.l.b16 %v71
  %v476 = vunpack.c.l.b16 %v72
  %v477 = vunpack.c.l.b16 %v73
  %v478 = vunpack.c.l.b16 %v74
  %v479 = vunpack.c.l.b16 %v75
  %v480 = vunpack.c.l.b16 %v76
  %v481 = vunpack.c.l.b16 %v77
  %v482 = vunpack.c.l.b16 %v78
  %v483 = vunpack.c.l.b16 %v79
  %v484 = vunpack.c.l.b16 %v80
  %v485 = vunpack.c.l.b16 %v81
  %v486 = vunpack.c.l.b16 %v82
  %v487 = vunpack.c.l.b16 %v83
  %v488 = vunpack.c.l.b16 %v84
  %v489 = vunpack.c.l.b16 %v85
  %v490 = vunpack.c.l.b16 %v86
  %v491 = vunpack.c.l.b16 %v87
  %v492 = vunpack.c.l.b16 %v88
  %v493 = vunpack.c.l.b16 %v89
  %v494 = vunpack.c.l.b16 %v90
  %v495 = vunpack.c.l.b16 %v91
  %v496 = vunpack.c.l.b16 %v92
  %v497 = vunpack.c.l.b16 %v93
  %v498 = vunpack.c.l.b16 %v94
  %v499 = vunpack.c.l.b16 %v95
  %v500 = vunpack.c.l.b16 %v96
  %v501 = vunpack.c.l.b16 %v97
  %v502 = vunpack.c.l.b16 %v98
  %v503 = vunpack.c.l.b16 %v99
  %v504 = vunpack.c.l.b16 %v100
  %v505 = vunpack.c.l.b16 %v101
  %v506 = vunpack.c.l.b16 %v102
  %v507 = vunpack.c.l.b16 %v103
  %v508 = vunpack.c.l.b16 %v104
  %v509 = vunpack.c.l.b16 %v105
  %v510 = vunpack.c.l.b16 %v106
  %v511 = vunpack.c.l.b16 %v107
  %v512 = vunpack.c.l.b16 %v108
  %v513 = vunpack.c.l.b16 %v109
  %v514 = vunpack.c.l.b16 %v110
  %v515 = vunpack.c.l.b16 %v111
  %v516 = vunpack.c.l.b16 %v112
  %v517 = vunpack.c.l.b16 %v113
  %v518 = vunpack.c.l.b16 %v114
  %v519 = vunpack.c.l.b16 %v115
  %v520 = vunpack.c.l.b16 %v116
  %v521 = vunpack.c.l.b16 %v117
  %v522 = vunpack.c.l.b16 %v118
  %v523 = vunpack.c.l.b16 %v119
  %v524 = vunpack.c.l.b16 %v120
  %v525 = vunpack.c.l.b16 %v121
  %v526 = vunpack.c.l.b16 %v122
  %v527 = vunpack.c.l.b16 %v123
  %v528 = vunpack.c.l.b16 %v124
  %v529 = vunpack.c.l.b16 %v125
  %v530 = vunpack.c.l.b16 %v126
  %v531 = vunpack.c.l.b16 %v127
  %v532 = vunpack.c.l.b16 %v128
  %v533 = vunpack.c.l.b16 %v129
  %v534 = vunpack.c.l.b16 %v130
  %v535 = vunpack.c.l.b16 %v131
  %v536 = vunpack.c.l.b16 %v132
  %v537 = vunpack.c.l.b16 %v133
  %v538 = vunpack.c.l.b16 %v134
  %v539 = vunpack.c.l.b16 %v135
  %v540 = vunpack.c.l.b16 %v136
  %v541 = vunpack.c.l.b16 %v137
  %v542 = vunpack.c.l.b16 %v138
  %v543 = vunpack.c.l.b16 %v139
  %v544 = vunpack.c.l.b16 %v140
  %v545 = vunpack.c.l.b16 %v141
  %v546 = vunpack.c.l.b16 %v142
  %v547 = vunpack.c.l.b16 %v143
  %v548 = vunpack.c.l.b16 %v144
  %v549 = vunpack.c.l.b16 %v145
  %v550 = vunpack.c.l.b16 %v146
  %v551 = vunpack.c.l.b16 %v147
  %v552 = vunpack.c.l.b16 %v148
  %v553 = vunpack.c.l.b16 %v149
  %v554 = vunpack.c.l.b16 %v150
  %v555 = vunpack.c.l.b16 %v151
  %v556 = vunpack.c.l.b16 %v152
  %v557 = vunpack.c.l.b16 %v153
  %v558 = vunpack.c.l.b16 %v154
  %v559 = vunpack.c.l.b16 %v155
  %v560 = vunpack.c.l.b16 %v156
  %v561 = vunpack.c.l.b16 %v157
  %v562 = vunpack.c.l.b16 %v158
  %v563 = vunpack.c.l.b16 %v159
  %v564 = vunpack.c.l.b16 %v160
  %v565 = vunpack.c.l.b16 %v161
  %v566 = vunpack.c.l.b16 %v162
  %v567 = vunpack.c.l.b16 %v163
  %v568 = vunpack.c.l.b16 %v164
  %v569 = vunpack.c.l.b16 %v165
  %v570 = vunpack.c.l.b16 %v166
  %v571 = vunpack.c.l.b16 %v167
  %v572 = vunpack.c.l.b16 %v168
  %v573 = vunpack.c.l.b16 %v169
  %v574 = vunpack.c.l.b16 %v170
  %v575 = vunpack.c.l.b16 %v171
  %v576 = vunpack.c.l.b16 %v172
  %v577 = vunpack.c.l.b16 %v173
  %v578 = vunpack.c.l.b16 %v174
  %v579 = vunpack.c.l.b16 %v175
  %v580 = vunpack.c.l.b16 %v176
  %v581 = vunpack.c.l.b16 %v177
  %v582 = vunpack.c.l.b16 %v178
  %v583 = vunpack.c.l.b16 %v179
  %v584 = vunpack.c.l.b16 %v180
  %v585 = vunpack.c.l.b16 %v181
  %v586 = vunpack.c.l.b16 %v182
  %v587 = vunpack.c.l.b16 %v183
  %v588 = vunpack.c.l.b16 %v184
  %v589 = vunpack.c.l.b16 %v185
  %v590 = vunpack.c.l.b16 %v186
  %v591 = vunpack.c.l.b16 %v187
  %v592 = vpack.c.b16 %v465, %v464
  %v593 = vpack.c.b16 %v467, %v466
  %v594 = vpack.c.b16 %v469, %v468
  %v595 = vpack.c.b16 %v471, %v470
  %v596 = vpack.c.b16 %v473, %v472
  %v597 = vpack.c.b16 %v475, %v474
  %v598 = vpack.c.b16 %v477, %v476
  %v599 = vpack.c.b16 %v479, %v478
  %v600 = vpack.c.b16 %v481, %v480
  %v601 = vpack.c.b16 %v483, %v482
  %v602 = vpack.c.b16 %v485, %v484
  %v603 = vpack.c.b16 %v487, %v486
  %v604 = vpack.c.b16 %v489, %v488
  %v605 = vpack.c.b16 %v491, %v490
  %v606 = vpack.c.b16 %v493, %v492
  %v607 = vpack.c.b16 %v495, %v494
  %v608 = vpack.c.b16 %v497, %v496
  %v609 = vpack.c.b16 %v499, %v498
  %v610 = vpack.c.b16 %v501, %v500
  %v611 = vpack.c.b16 %v503, %v502
  %v612 = vpack.c.b16 %v505, %v504
  %v613 = vpack.c.b16 %v507, %v506
  %v614 = vpack.c.b16 %v509, %v508
  %v615 = vpack.c.b16 %v511, %v510
  %v616 = vpack.c.b16 %v513, %v512
  %v617 = vpack.c.b16 %v515, %v514
  %v618 = vpack.c.b16 %v517, %v516
  %v619 = vpack.c.b16 %v519, %v518
  %v620 = vpack.c.b16 %v521, %v520
  %v621 = vpack.c.b16 %v523, %v522
  %v622 = vpack.c.b16 %v525, %v524
  %v623 = vpack.c.b16 %v527, %v526
  %v624 = vpack.c.b16 %v529, %v528
  %v625 = vpack.c.b16 %v531, %v530
  %v626 = vpack.c.b16 %v533, %v532
  %v627 = vpack.c.b16 %v535, %v534
  %v628 = vpack.c.b16 %v537, %v536
  %v629 = vpack.c.b16 %v539, %v538
  %v630 = vpack.c.b16 %v541, %v540
  %v631 = vpack.c.b16 %v543, %v542
  %v632 = vpack.c.b16 %v545, %v544
  %v633 = vpack.c.b16 %v547, %v546
  %v634 = vpack.c.b16 %v549, %v548
  %v635 = vpack.c.b16 %v551, %v550
  %v636 = vpack.c.b16 %v553, %v552
  %v637 = vpack.c.b16 %v555, %v554
  %v638 = vpack.c.b16 %v557, %v556
  %v639 = vpack.c.b16 %v559, %v558
  %v640 = vpack.c.b16 %v561, %v560
  %v641 = vpack.c.b16 %v563, %v562
  %v642 = vpack.c.b16 %v565, %v564
  %v643 = vpack.c.b16 %v567, %v566
  %v644 = vpack.c.b16 %v569, %v568
  %v645 = vpack.c.b16 %v571, %v570
  %v646 = vpack.c.b16 %v573, %v572
  %v647 = vpack.c.b16 %v575, %v574
  %v648 = vpack.c.b16 %v577, %v576
  %v649 = vpack.c.b16 %v579, %v578
  %v650 = vpack.c.b16 %v581, %v580
  %v651 = vpack.c.b16 %v583, %v582
  %v652 = vpack.c.b16 %v585, %v584
  %v653 = vpack.c.b16 %v587, %v586
  %v654 = vpack.c.b16 %v589, %v588
  %v655 = vpack.c.b16 %v591, %v590
  %720 = vmatpush.bf16.msra.mxu0 %v599
  %721 = vmatpush.bf16.msra.mxu0 %v598
  %722 = vmatpush.bf16.msra.mxu0 %v597
  %723 = vmatpush.bf16.msra.mxu0 %v596
  %724 = vmatpush.bf16.msra.mxu0 %v595
  %725 = vmatpush.bf16.msra.mxu0 %v594
  %726 = vmatpush.bf16.msra.mxu0 %v593
  %727 = vmatpush.bf16.msra.mxu0 %v592
  %728 = vmatmul.bf16.gmra.mxu0 %v272
  %v729 = vpop.f32.mrf.mxu0
  %v730 = vadd.f32 0.0, %v729
  %v731 = vpop.f32.mrf.mxu0
  %v732 = vadd.f32 0.0, %v731
  %733 = vmatmul.bf16.gmra.mxu0 %v280
  %v734 = vpop.f32.mrf.mxu0
  %v735 = vadd.f32 0.0, %v734
  %v736 = vpop.f32.mrf.mxu0
  %v737 = vadd.f32 0.0, %v736
  %738 = vmatmul.bf16.gmra.mxu0 %v288
  %v739 = vpop.f32.mrf.mxu0
  %v740 = vadd.f32 0.0, %v739
  %v741 = vpop.f32.mrf.mxu0
  %v742 = vadd.f32 0.0, %v741
  %743 = vmatmul.bf16.gmra.mxu0 %v296
  %v744 = vpop.f32.mrf.mxu0
  %v745 = vadd.f32 0.0, %v744
  %v746 = vpop.f32.mrf.mxu0
  %747 = vdwg.mxu0
  %748 = vmatpush.bf16.msra.mxu0 %v607
  %749 = vmatpush.bf16.msra.mxu0 %v606
  %750 = vmatpush.bf16.msra.mxu0 %v605
  %751 = vmatpush.bf16.msra.mxu0 %v604
  %752 = vmatpush.bf16.msra.mxu0 %v603
  %753 = vmatpush.bf16.msra.mxu0 %v602
  %754 = vmatpush.bf16.msra.mxu0 %v601
  %755 = vmatpush.bf16.msra.mxu0 %v600
  %756 = vmatmul.bf16.gmra.mxu0 %v273
  %v757 = vpop.f32.mrf.mxu0
  %v758 = vadd.f32 %v730, %v757
  %v759 = vpop.f32.mrf.mxu0
  %v760 = vadd.f32 %v732, %v759
  %761 = vmatmul.bf16.gmra.mxu0 %v281
  %v762 = vpop.f32.mrf.mxu0
  %v763 = vadd.f32 %v735, %v762
  %v764 = vpop.f32.mrf.mxu0
  %v765 = vadd.f32 %v737, %v764
  %766 = vmatmul.bf16.gmra.mxu0 %v289
  %v767 = vpop.f32.mrf.mxu0
  %v768 = vadd.f32 %v740, %v767
  %v769 = vpop.f32.mrf.mxu0
  %v770 = vadd.f32 %v742, %v769
  %771 = vmatmul.bf16.gmra.mxu0 %v297
  %v772 = vpop.f32.mrf.mxu0
  %v773 = vadd.f32 %v745, %v772
  %v774 = vpop.f32.mrf.mxu0
  %775 = vdwg.mxu0
  %776 = vmatpush.bf16.msra.mxu0 %v615
  %777 = vmatpush.bf16.msra.mxu0 %v614
  %778 = vmatpush.bf16.msra.mxu0 %v613
  %779 = vmatpush.bf16.msra.mxu0 %v612
  %780 = vmatpush.bf16.msra.mxu0 %v611
  %781 = vmatpush.bf16.msra.mxu0 %v610
  %782 = vmatpush.bf16.msra.mxu0 %v609
  %783 = vmatpush.bf16.msra.mxu0 %v608
  %784 = vmatmul.bf16.gmra.mxu0 %v274
  %v785 = vpop.f32.mrf.mxu0
  %v786 = vadd.f32 %v758, %v785
  %v787 = vpop.f32.mrf.mxu0
  %v788 = vadd.f32 %v760, %v787
  %789 = vmatmul.bf16.gmra.mxu0 %v282
  %v790 = vpop.f32.mrf.mxu0
  %v791 = vadd.f32 %v763, %v790
  %v792 = vpop.f32.mrf.mxu0
  %v793 = vadd.f32 %v765, %v792
  %794 = vmatmul.bf16.gmra.mxu0 %v290
  %v795 = vpop.f32.mrf.mxu0
  %v796 = vadd.f32 %v768, %v795
  %v797 = vpop.f32.mrf.mxu0
  %v798 = vadd.f32 %v770, %v797
  %799 = vmatmul.bf16.gmra.mxu0 %v298
  %v800 = vpop.f32.mrf.mxu0
  %v801 = vadd.f32 %v773, %v800
  %v802 = vpop.f32.mrf.mxu0
  %803 = vdwg.mxu0
  %804 = vmatpush.bf16.msra.mxu0 %v623
  %805 = vmatpush.bf16.msra.mxu0 %v622
  %806 = vmatpush.bf16.msra.mxu0 %v621
  %807 = vmatpush.bf16.msra.mxu0 %v620
  %808 = vmatpush.bf16.msra.mxu0 %v619
  %809 = vmatpush.bf16.msra.mxu0 %v618
  %810 = vmatpush.bf16.msra.mxu0 %v617
  %811 = vmatpush.bf16.msra.mxu0 %v616
  %812 = vmatmul.bf16.gmra.mxu0 %v275
  %v813 = vpop.f32.mrf.mxu0
  %v814 = vadd.f32 %v786, %v813
  %v815 = vpop.f32.mrf.mxu0
  %v816 = vadd.f32 %v788, %v815
  %817 = vmatmul.bf16.gmra.mxu0 %v283
  %v818 = vpop.f32.mrf.mxu0
  %v819 = vadd.f32 %v791, %v818
  %v820 = vpop.f32.mrf.mxu0
  %v821 = vadd.f32 %v793, %v820
  %822 = vmatmul.bf16.gmra.mxu0 %v291
  %v823 = vpop.f32.mrf.mxu0
  %v824 = vadd.f32 %v796, %v823
  %v825 = vpop.f32.mrf.mxu0
  %v826 = vadd.f32 %v798, %v825
  %827 = vmatmul.bf16.gmra.mxu0 %v299
  %v828 = vpop.f32.mrf.mxu0
  %v829 = vadd.f32 %v801, %v828
  %v830 = vpop.f32.mrf.mxu0
  %831 = vdwg.mxu0
  %832 = vmatpush.bf16.msra.mxu0 %v631
  %833 = vmatpush.bf16.msra.mxu0 %v630
  %834 = vmatpush.bf16.msra.mxu0 %v629
  %835 = vmatpush.bf16.msra.mxu0 %v628
  %836 = vmatpush.bf16.msra.mxu0 %v627
  %837 = vmatpush.bf16.msra.mxu0 %v626
  %838 = vmatpush.bf16.msra.mxu0 %v625
  %839 = vmatpush.bf16.msra.mxu0 %v624
  %840 = vmatmul.bf16.gmra.mxu0 %v276
  %v841 = vpop.f32.mrf.mxu0
  %v842 = vadd.f32 %v814, %v841
  %v843 = vpop.f32.mrf.mxu0
  %v844 = vadd.f32 %v816, %v843
  %845 = vmatmul.bf16.gmra.mxu0 %v284
  %v846 = vpop.f32.mrf.mxu0
  %v847 = vadd.f32 %v819, %v846
  %v848 = vpop.f32.mrf.mxu0
  %v849 = vadd.f32 %v821, %v848
  %850 = vmatmul.bf16.gmra.mxu0 %v292
  %v851 = vpop.f32.mrf.mxu0
  %v852 = vadd.f32 %v824, %v851
  %v853 = vpop.f32.mrf.mxu0
  %v854 = vadd.f32 %v826, %v853
  %855 = vmatmul.bf16.gmra.mxu0 %v300
  %v856 = vpop.f32.mrf.mxu0
  %v857 = vadd.f32 %v829, %v856
  %v858 = vpop.f32.mrf.mxu0
  %859 = vdwg.mxu0
  %860 = vmatpush.bf16.msra.mxu0 %v639
  %861 = vmatpush.bf16.msra.mxu0 %v638
  %862 = vmatpush.bf16.msra.mxu0 %v637
  %863 = vmatpush.bf16.msra.mxu0 %v636
  %864 = vmatpush.bf16.msra.mxu0 %v635
  %865 = vmatpush.bf16.msra.mxu0 %v634
  %866 = vmatpush.bf16.msra.mxu0 %v633
  %867 = vmatpush.bf16.msra.mxu0 %v632
  %868 = vmatmul.bf16.gmra.mxu0 %v277
  %v869 = vpop.f32.mrf.mxu0
  %v870 = vadd.f32 %v842, %v869
  %v871 = vpop.f32.mrf.mxu0
  %v872 = vadd.f32 %v844, %v871
  %873 = vmatmul.bf16.gmra.mxu0 %v285
  %v874 = vpop.f32.mrf.mxu0
  %v875 = vadd.f32 %v847, %v874
  %v876 = vpop.f32.mrf.mxu0
  %v877 = vadd.f32 %v849, %v876
  %878 = vmatmul.bf16.gmra.mxu0 %v293
  %v879 = vpop.f32.mrf.mxu0
  %v880 = vadd.f32 %v852, %v879
  %v881 = vpop.f32.mrf.mxu0
  %v882 = vadd.f32 %v854, %v881
  %883 = vmatmul.bf16.gmra.mxu0 %v301
  %v884 = vpop.f32.mrf.mxu0
  %v885 = vadd.f32 %v857, %v884
  %v886 = vpop.f32.mrf.mxu0
  %887 = vdwg.mxu0
  %888 = vmatpush.bf16.msra.mxu0 %v647
  %889 = vmatpush.bf16.msra.mxu0 %v646
  %890 = vmatpush.bf16.msra.mxu0 %v645
  %891 = vmatpush.bf16.msra.mxu0 %v644
  %892 = vmatpush.bf16.msra.mxu0 %v643
  %893 = vmatpush.bf16.msra.mxu0 %v642
  %894 = vmatpush.bf16.msra.mxu0 %v641
  %895 = vmatpush.bf16.msra.mxu0 %v640
  %896 = vmatmul.bf16.gmra.mxu0 %v278
  %v897 = vpop.f32.mrf.mxu0
  %v898 = vadd.f32 %v870, %v897
  %v899 = vpop.f32.mrf.mxu0
  %v900 = vadd.f32 %v872, %v899
  %901 = vmatmul.bf16.gmra.mxu0 %v286
  %v902 = vpop.f32.mrf.mxu0
  %v903 = vadd.f32 %v875, %v902
  %v904 = vpop.f32.mrf.mxu0
  %v905 = vadd.f32 %v877, %v904
  %906 = vmatmul.bf16.gmra.mxu0 %v294
  %v907 = vpop.f32.mrf.mxu0
  %v908 = vadd.f32 %v880, %v907
  %v909 = vpop.f32.mrf.mxu0
  %v910 = vadd.f32 %v882, %v909
  %911 = vmatmul.bf16.gmra.mxu0 %v302
  %v912 = vpop.f32.mrf.mxu0
  %v913 = vadd.f32 %v885, %v912
  %v914 = vpop.f32.mrf.mxu0
  %915 = vdwg.mxu0
  %916 = vmatpush.bf16.msra.mxu0 %v655
  %917 = vmatpush.bf16.msra.mxu0 %v654
  %918 = vmatpush.bf16.msra.mxu0 %v653
  %919 = vmatpush.bf16.msra.mxu0 %v652
  %920 = vmatpush.bf16.msra.mxu0 %v651
  %921 = vmatpush.bf16.msra.mxu0 %v650
  %922 = vmatpush.bf16.msra.mxu0 %v649
  %923 = vmatpush.bf16.msra.mxu0 %v648
  %924 = vmatmul.bf16.gmra.mxu0 %v279
  %v925 = vpop.f32.mrf.mxu0
  %v926 = vadd.f32 %v898, %v925
  %v927 = vpop.f32.mrf.mxu0
  %v928 = vadd.f32 %v900, %v927
  %929 = vmatmul.bf16.gmra.mxu0 %v287
  %v930 = vpop.f32.mrf.mxu0
  %v931 = vadd.f32 %v903, %v930
  %v932 = vpop.f32.mrf.mxu0
  %v933 = vadd.f32 %v905, %v932
  %934 = vmatmul.bf16.gmra.mxu0 %v295
  %v935 = vpop.f32.mrf.mxu0
  %v936 = vadd.f32 %v908, %v935
  %v937 = vpop.f32.mrf.mxu0
  %v938 = vadd.f32 %v910, %v937
  %939 = vmatmul.bf16.gmra.mxu0 %v303
  %v940 = vpop.f32.mrf.mxu0
  %v941 = vadd.f32 %v913, %v940
  %v942 = vpop.f32.mrf.mxu0
  %943 = vdwg.mxu0
  %v944 = vadd.f32 %v25, %v926
  %v945 = vadd.f32 %v26, %v928
  %v946 = vadd.f32 %v27, %v931
  %v947 = vadd.f32 %v28, %v933
  %v948 = vadd.f32 %v29, %v936
  %v949 = vadd.f32 %v30, %v938
  %v950 = vadd.f32 %v31, %v941
  %951 = vst [vmem:[#allocation2] sm:$0xff] %v944
  %952 = vst [vmem:[#allocation2 + $0x8] sm:$0xff] %v945
  %953 = vst [vmem:[#allocation2 + $0x10] sm:$0xff] %v946
  %954 = vst [vmem:[#allocation2 + $0x18] sm:$0xff] %v947
  %955 = vst [vmem:[#allocation2 + $0x20] sm:$0xff] %v948
  %956 = vst [vmem:[#allocation2 + $0x28] sm:$0xff] %v949
  %957 = vst [vmem:[#allocation2 + $0x30] sm:$0xff] %v950
  // Predicated region
  $region18: #{_lambda_.9} parent=0 // pred_check
    %p958 = pneg %p14
  $region19: #{_lambda_.9} parent=0 // pred_check_branch
    %960 = sbr.rel (%p958) target = $region21
  $region20: #{_lambda_.9} parent=0 // pred_region
    %v961 = vld [vmem:[#allocation2] sm:$0xff]
    %v962 = vld [vmem:[#allocation2 + $0x8] sm:$0xff]
    %v963 = vld [vmem:[#allocation2 + $0x10] sm:$0xff]
    %v964 = vld [vmem:[#allocation2 + $0x18] sm:$0xff]
    %v965 = vld [vmem:[#allocation2 + $0x20] sm:$0xff]
    %v966 = vld [vmem:[#allocation2 + $0x28] sm:$0xff]
    %v967 = vld [vmem:[#allocation2 + $0x30] sm:$0xff]
    %v968 = vld [vmem:[%s2] sm:$0x1]
    %v970 = vperm.slane %v968, 0
    %v972 = vadd.f32 %v961, %v970
    %v973 = vadd.f32 %v962, %v970
    %v974 = vadd.f32 %v963, %v970
    %v975 = vadd.f32 %v964, %v970
    %v976 = vadd.f32 %v965, %v970
    %v977 = vadd.f32 %v966, %v970
    %v978 = vadd.f32 %v967, %v970
    %979 = vst [vmem:[%s3] sm:$0xff] %v972
    %980 = vst [vmem:[%s3 + $0x8] sm:$0xff] %v973
    %981 = vst [vmem:[%s3 + $0x10] sm:$0xff] %v974
    %982 = vst [vmem:[%s3 + $0x18] sm:$0xff] %v975
    %983 = vst [vmem:[%s3 + $0x20] sm:$0xff] %v976
    %984 = vst [vmem:[%s3 + $0x28] sm:$0xff] %v977
    %985 = vst [vmem:[%s3 + $0x30] sm:$0xff] %v978
  $region21: #{_lambda_.9} parent=0 // pred_fallthru
    _
  // Predicated region
  $region22: #{_lambda_.9} parent=0 // pred_check
    _
  $region23: #{_lambda_.9} parent=0 // pred_check_branch
    %987 = sbr.rel (0) target = $region25
  $region24: #{_lambda_.9} parent=0 // pred_region
    _
  $region25: #{_lambda_.9} parent=0 // pred_fallthru
    _
  // Predicated region
  $region26: #{_lambda_.9} parent=0 // pred_check
    _
  $region27: #{_lambda_.9} parent=0 // pred_check_branch
    %989 = sbr.rel (0) target = $region29
  $region28: #{_lambda_.9} parent=0 // pred_region
    _
  $region29: #{_lambda_.9} parent=0 // pred_fallthru
    _

</llo_original>
